<compile_context>
chip_gen: v6e
topology: v6e:2x2x1
jax: 0.10.0
libtpu: 0.0.40
codegen_flags: <defaults>
</compile_context>

<pallas_src>
import math
import functools

import numpy as np
import jax
import jax.numpy as jnp
from jax import lax
from jax.experimental import pallas as pl
from jax.experimental.pallas import tpu as pltpu

TEMP_FEAT_NAMES = ["hour", "day", "week"]   # synthetic choice of temporal features
BN_EPS = 1e-5


# ---------------------------------------------------------------------------
# Single fused kernel: F per-feature LSTMs (last hidden state) -> mean merge
# -> BatchNorm1d epilogue.  Everything stays VMEM/vreg-resident.
# ---------------------------------------------------------------------------
def _fused_temp_recurrent_kernel(x_ref, wx_ref, wh_ref, b_ref, gamma_ref,
                                 beta_ref, o_ref, gx_ref, *, eps):
    """x_ref: (F, T, M, H);  wx_ref/wh_ref: (F, H, 4H) gate cols [i,f,o,g];
    b_ref: (F, 1, 4H);  gamma/beta: (1, H);  o_ref: (M, H);
    gx_ref (VMEM scratch): (T, F, M, 4H)  -- precomputed input projections."""
    F, T, M, H = x_ref.shape

    # ---- Prologue: hoist x @ W_ih (+ fused bias) out of the recurrence. ----
    # One well-pipelined (T*M, H) x (H, 4H) MXU push per feature; independent of
    # the serial chain.  Bias is added once here (kills per-step re-broadcasts).
    for f in range(F):                              # static unroll, F = 3
        x_f = x_ref[f].reshape(T * M, H)            # leading-dim collapse (free)
        gx_f = jnp.dot(x_f, wx_ref[f],
                       preferred_element_type=jnp.float32) + b_ref[f]   # (T*M,4H)
        gx_ref[:, pl.ds(f, 1)] = gx_f.reshape(T, 1, M, 4 * H)

    wh = wh_ref[...]                                # (F, H, 4H) resident weights

    # ---- Recurrence: time outer, the F=3 independent chains interleaved. ----
    def step(t, carry):
        h, c = carry                                # (F, M, H) each
        # Three independent K=32 recurrent matmuls issued back-to-back (batched
        # over the feature axis) + the precomputed input projection.
        gates = gx_ref[t] + jnp.einsum(
            'fmk,fkn->fmn', h, wh,
            preferred_element_type=jnp.float32)     # (F, M, 4H)
        # Gate columns are [i, f, o, g]: one sigmoid slab + one tanh slab.
        # (The lane sub-slices below are XLU extracts but hidden under the
        #  MXU/EUP latency of the interleaved chains -- leave as is.)
        sig = jax.nn.sigmoid(gates[..., :3 * H])    # i, f, o
        g_g = jnp.tanh(gates[..., 3 * H:])          # g
        i_g = sig[..., 0:H]
        f_g = sig[..., H:2 * H]
        o_g = sig[..., 2 * H:3 * H]
        c_new = f_g * c + i_g * g_g
        h_new = o_g * jnp.tanh(c_new)
        return h_new, c_new

    h0 = jnp.zeros((F, M, H), jnp.float32)
    c0 = jnp.zeros((F, M, H), jnp.float32)
    unroll = True if T <= 8 else 4                  # cap unroll for long sequences
    h_T, _ = lax.fori_loop(0, T, step, (h0, c0), unroll=unroll)

    # ---- merge='mean' over features + BatchNorm1d (training-mode biased batch
    # statistics per embedding channel over the B*N axis). ----
    merged = jnp.mean(h_T, axis=0)                  # (M, H)
    mean = jnp.mean(merged, axis=0, keepdims=True)
    var = jnp.mean((merged - mean) ** 2, axis=0, keepdims=True)
    norm = (merged - mean) * lax.rsqrt(var + eps)
    o_ref[...] = norm * gamma_ref[...] + beta_ref[...]


def temp_recurrent_fused(x_stacked, wx, wh, b, gamma, beta):
    """x_stacked: (F, T, M, H); wx/wh: (F, H, 4H); b: (F, 1, 4H)."""
    F, T, M, H = x_stacked.shape
    vmem = pl.BlockSpec(memory_space=pltpu.MemorySpace.VMEM)
    # Right-sized VMEM budget (inputs + scratch + output, 4x headroom, >= 2 MiB).
    data_bytes = 4 * (x_stacked.size + wx.size + wh.size + b.size
                      + gamma.size + beta.size + M * H + T * F * M * 4 * H)
    vmem_limit = max(4 * data_bytes, 2 * 1024 * 1024)
    # TODO(synk): for production M = B*N, tile the M axis with a 'parallel' grid
    # (per-block partial BN sums + tiny epilogue) so the HBM DMA pipelines and
    # both v7x TensorCores are used; also cast x/weights to bf16 on v6e/v7x and
    # consider a block-diagonal W_hh to cut the per-step MXU issue count.
    return pl.pallas_call(
        functools.partial(_fused_temp_recurrent_kernel, eps=BN_EPS),
        out_shape=jax.ShapeDtypeStruct((M, H), jnp.float32),
        in_specs=[vmem] * 6,
        out_specs=vmem,
        scratch_shapes=[pltpu.VMEM((T, F, M, 4 * H), jnp.float32)],
        compiler_params=pltpu.CompilerParams(vmem_limit_bytes=int(vmem_limit)),
    )(x_stacked, wx, wh, b, gamma, beta)


# ---------------------------------------------------------------------------
# Parameters: PyTorch-layout LSTM params + packing into the kernel layout.
# ---------------------------------------------------------------------------
def init_params(key, embed_dim, num_feats):
    bound = 1.0 / math.sqrt(embed_dim)
    params = []
    for f in range(num_feats):
        k = jax.random.fold_in(key, f)
        k1, k2, k3, k4 = jax.random.split(k, 4)
        params.append({
            "w_ih": jax.random.uniform(k1, (4 * embed_dim, embed_dim),
                                       jnp.float32, -bound, bound),
            "w_hh": jax.random.uniform(k2, (4 * embed_dim, embed_dim),
                                       jnp.float32, -bound, bound),
            "b_ih": jax.random.uniform(k3, (4 * embed_dim,), jnp.float32, -bound, bound),
            "b_hh": jax.random.uniform(k4, (4 * embed_dim,), jnp.float32, -bound, bound),
        })
    bn = {"gamma": jnp.ones((1, embed_dim), jnp.float32),
          "beta": jnp.zeros((1, embed_dim), jnp.float32)}
    return params, bn


def pack_lstm_params(lstm_params, embed_dim):
    """Split-pack W_ih / W_hh into (F, H, 4H) operands (so the input projection
    can be hoisted) and permute the PyTorch gate order [i, f, g, o] -> [i, f, o, g]."""
    H = embed_dim
    perm = np.concatenate([np.arange(0, 2 * H),        # i, f
                           np.arange(3 * H, 4 * H),    # o
                           np.arange(2 * H, 3 * H)])   # g
    wxs, whs, bs = [], [], []
    for p in lstm_params:
        wxs.append(p["w_ih"][perm].T)                  # (H, 4H)
        whs.append(p["w_hh"][perm].T)                  # (H, 4H)
        bs.append((p["b_ih"] + p["b_hh"])[perm].reshape(1, 4 * H))
    return jnp.stack(wxs), jnp.stack(whs), jnp.stack(bs)   # (F,H,4H) x2, (F,1,4H)


# ---------------------------------------------------------------------------
# TempRecurrentLayer wrapper
# ---------------------------------------------------------------------------
def temp_recurrent_layer(embed_feat_dict, lstm_params, bn_params, embed_dim):
    """embed_feat_dict: {feat_name: list of (B, N, H) arrays (the record_list)}."""
    xs = []
    num_nodes = None
    for name in TEMP_FEAT_NAMES:
        records = jnp.stack(embed_feat_dict[name])             # (T, B, N, H)
        num_nodes = records.shape[-2]
        xs.append(records.reshape(records.shape[0], -1, embed_dim))  # (T, B*N, H)
    x_stacked = jnp.stack(xs)                                  # (F, T, B*N, H)
    wx, wh, b = pack_lstm_params(lstm_params, embed_dim)
    out_flat = temp_recurrent_fused(x_stacked, wx, wh, b,
                                    bn_params["gamma"], bn_params["beta"])
    return out_flat.reshape(-1, num_nodes, embed_dim)          # (B, N, H)


# ---------------------------------------------------------------------------
# Pure-JAX reference (original PyTorch gate order / separate matmuls)
# ---------------------------------------------------------------------------
def _ref_lstm_last_hidden(x, p):
    T, B, H = x.shape
    h = jnp.zeros((B, H), jnp.float32)
    c = jnp.zeros((B, H), jnp.float32)
    w_ih_t = p["w_ih"].T
    w_hh_t = p["w_hh"].T
    b = (p["b_ih"] + p["b_hh"]).reshape(1, 4 * H)
    for t in range(T):
        gates = x[t] @ w_ih_t + h @ w_hh_t + b
        i = jax.nn.sigmoid(gates[:, 0:H])
        f = jax.nn.sigmoid(gates[:, H:2 * H])
        g = jnp.tanh(gates[:, 2 * H:3 * H])
        o = jax.nn.sigmoid(gates[:, 3 * H:4 * H])
        c = f * c + i * g
        h = o * jnp.tanh(c)
    return h


def _ref_forward(embed_feat_dict, lstm_params, bn_params, embed_dim):
    hs = []
    n = None
    for fi, name in enumerate(TEMP_FEAT_NAMES):
        records = jnp.stack(embed_feat_dict[name])
        n = records.shape[-2]
        x = records.reshape(records.shape[0], -1, embed_dim)
        hs.append(_ref_lstm_last_hidden(x, lstm_params[fi]))
    merged = sum(hs) / len(hs)
    mean = jnp.mean(merged, axis=0, keepdims=True)
    var = jnp.mean((merged - mean) ** 2, axis=0, keepdims=True)
    norm = (merged - mean) / jnp.sqrt(var + BN_EPS)
    out = norm * bn_params["gamma"] + bn_params["beta"]
    return out.reshape(-1, n, embed_dim)


if __name__ == "__main__":
    embed_dim = 32
    batch = 2
    num_nodes = 8
    num_records = 4          # sequence length (len of record_list)

    key = jax.random.PRNGKey(0)
    pkey, dkey = jax.random.split(key)
    lstm_params, bn_params = init_params(pkey, embed_dim, len(TEMP_FEAT_NAMES))

    embed_feat_dict = {}
    for fi, name in enumerate(TEMP_FEAT_NAMES):
        fkey = jax.random.fold_in(dkey, fi)
        embed_feat_dict[name] = [
            jax.random.normal(jax.random.fold_in(fkey, t),
                              (batch, num_nodes, embed_dim), jnp.float32)
            for t in range(num_records)
        ]

    out = temp_recurrent_layer(embed_feat_dict, lstm_params, bn_params, embed_dim)
    out = jax.block_until_ready(out)

    ref = _ref_forward(embed_feat_dict, lstm_params, bn_params, embed_dim)
    np.testing.assert_allclose(np.asarray(out), np.asarray(ref), rtol=2e-4, atol=2e-4)
    assert out.shape == (batch, num_nodes, embed_dim)

    print("KERNEL_OK")
</pallas_src>

<mosaic_0001>
module attributes {stable_mosaic.version = 11 : i64} {
  func.func @_fused_temp_recurrent_kernel(%arg0: memref<3x4x16x32xf32, #tpu.memory_space<vmem>>, %arg1: memref<3x32x128xf32, #tpu.memory_space<vmem>>, %arg2: memref<3x32x128xf32, #tpu.memory_space<vmem>>, %arg3: memref<3x1x128xf32, #tpu.memory_space<vmem>>, %arg4: memref<1x32xf32, #tpu.memory_space<vmem>>, %arg5: memref<1x32xf32, #tpu.memory_space<vmem>>, %arg6: memref<16x32xf32, #tpu.memory_space<vmem>>, %arg7: memref<4x3x16x128xf32, #tpu.memory_space<vmem>>) attributes {dimension_semantics = [], scalar_prefetch = 0 : i64, scratch_operands = 1 : i64, tpu.core_type = #tpu.core_type<tc>} {
    %c0 = arith.constant 0 : index
    %c0_0 = arith.constant 0 : index
    %c0_1 = arith.constant 0 : index
    %c0_2 = arith.constant 0 : index
    %0 = vector.load %arg0[%c0, %c0_0, %c0_1, %c0_2] : memref<3x4x16x32xf32, #tpu.memory_space<vmem>>, vector<1x4x16x32xf32>
    %1 = vector.shape_cast %0 : vector<1x4x16x32xf32> to vector<4x16x32xf32>
    %2 = vector.shape_cast %1 : vector<4x16x32xf32> to vector<64x32xf32>
    %c0_3 = arith.constant 0 : index
    %c0_4 = arith.constant 0 : index
    %c0_5 = arith.constant 0 : index
    %3 = vector.load %arg1[%c0_3, %c0_4, %c0_5] : memref<3x32x128xf32, #tpu.memory_space<vmem>>, vector<1x32x128xf32>
    %4 = vector.shape_cast %3 : vector<1x32x128xf32> to vector<32x128xf32>
    %cst = arith.constant dense<0.000000e+00> : vector<64x128xf32>
    %5 = tpu.matmul %2, %4, %cst {dimension_numbers = #tpu.dot_dimension_numbers<[1], [0], [0], [1], [0, 0, 1, 1], [], []>} : vector<64x32xf32>, vector<32x128xf32>, vector<64x128xf32> -> vector<64x128xf32>
    %c0_6 = arith.constant 0 : index
    %c0_7 = arith.constant 0 : index
    %c0_8 = arith.constant 0 : index
    %6 = vector.load %arg3[%c0_6, %c0_7, %c0_8] : memref<3x1x128xf32, #tpu.memory_space<vmem>>, vector<1x1x128xf32>
    %7 = vector.shape_cast %6 : vector<1x1x128xf32> to vector<1x128xf32>
    %8 = vector.broadcast %7 : vector<1x128xf32> to vector<64x128xf32>
    %9 = arith.addf %5, %8 : vector<64x128xf32>
    %10 = vector.shape_cast %9 : vector<64x128xf32> to vector<4x1x16x128xf32>
    %c0_9 = arith.constant 0 : index
    %c0_10 = arith.constant 0 : index
    %c0_11 = arith.constant 0 : index
    %c0_12 = arith.constant 0 : index
    %11 = vector.load %arg7[%c0_9, %c0_10, %c0_11, %c0_12] : memref<4x3x16x128xf32, #tpu.memory_space<vmem>>, vector<4x1x16x128xf32>
    tpu.vector_store %arg7[%c0_9, %c0_10, %c0_11, %c0_12], %10 {strides = array<i32>} : memref<4x3x16x128xf32, #tpu.memory_space<vmem>>, vector<4x1x16x128xf32>,
    %c1 = arith.constant 1 : index
    %c0_13 = arith.constant 0 : index
    %c0_14 = arith.constant 0 : index
    %c0_15 = arith.constant 0 : index
    %12 = vector.load %arg0[%c1, %c0_13, %c0_14, %c0_15] : memref<3x4x16x32xf32, #tpu.memory_space<vmem>>, vector<1x4x16x32xf32>
    %13 = vector.shape_cast %12 : vector<1x4x16x32xf32> to vector<4x16x32xf32>
    %14 = vector.shape_cast %13 : vector<4x16x32xf32> to vector<64x32xf32>
    %c1_16 = arith.constant 1 : index
    %c0_17 = arith.constant 0 : index
    %c0_18 = arith.constant 0 : index
    %15 = vector.load %arg1[%c1_16, %c0_17, %c0_18] : memref<3x32x128xf32, #tpu.memory_space<vmem>>, vector<1x32x128xf32>
    %16 = vector.shape_cast %15 : vector<1x32x128xf32> to vector<32x128xf32>
    %cst_19 = arith.constant dense<0.000000e+00> : vector<64x128xf32>
    %17 = tpu.matmul %14, %16, %cst_19 {dimension_numbers = #tpu.dot_dimension_numbers<[1], [0], [0], [1], [0, 0, 1, 1], [], []>} : vector<64x32xf32>, vector<32x128xf32>, vector<64x128xf32> -> vector<64x128xf32>
    %c1_20 = arith.constant 1 : index
    %c0_21 = arith.constant 0 : index
    %c0_22 = arith.constant 0 : index
    %18 = vector.load %arg3[%c1_20, %c0_21, %c0_22] : memref<3x1x128xf32, #tpu.memory_space<vmem>>, vector<1x1x128xf32>
    %19 = vector.shape_cast %18 : vector<1x1x128xf32> to vector<1x128xf32>
    %20 = vector.broadcast %19 : vector<1x128xf32> to vector<64x128xf32>
    %21 = arith.addf %17, %20 : vector<64x128xf32>
    %22 = vector.shape_cast %21 : vector<64x128xf32> to vector<4x1x16x128xf32>
    %c0_23 = arith.constant 0 : index
    %c1_24 = arith.constant 1 : index
    %c0_25 = arith.constant 0 : index
    %c0_26 = arith.constant 0 : index
    %23 = vector.load %arg7[%c0_23, %c1_24, %c0_25, %c0_26] : memref<4x3x16x128xf32, #tpu.memory_space<vmem>>, vector<4x1x16x128xf32>
    tpu.vector_store %arg7[%c0_23, %c1_24, %c0_25, %c0_26], %22 {strides = array<i32>} : memref<4x3x16x128xf32, #tpu.memory_space<vmem>>, vector<4x1x16x128xf32>,
    %c2 = arith.constant 2 : index
    %c0_27 = arith.constant 0 : index
    %c0_28 = arith.constant 0 : index
    %c0_29 = arith.constant 0 : index
    %24 = vector.load %arg0[%c2, %c0_27, %c0_28, %c0_29] : memref<3x4x16x32xf32, #tpu.memory_space<vmem>>, vector<1x4x16x32xf32>
    %25 = vector.shape_cast %24 : vector<1x4x16x32xf32> to vector<4x16x32xf32>
    %26 = vector.shape_cast %25 : vector<4x16x32xf32> to vector<64x32xf32>
    %c2_30 = arith.constant 2 : index
    %c0_31 = arith.constant 0 : index
    %c0_32 = arith.constant 0 : index
    %27 = vector.load %arg1[%c2_30, %c0_31, %c0_32] : memref<3x32x128xf32, #tpu.memory_space<vmem>>, vector<1x32x128xf32>
    %28 = vector.shape_cast %27 : vector<1x32x128xf32> to vector<32x128xf32>
    %cst_33 = arith.constant dense<0.000000e+00> : vector<64x128xf32>
    %29 = tpu.matmul %26, %28, %cst_33 {dimension_numbers = #tpu.dot_dimension_numbers<[1], [0], [0], [1], [0, 0, 1, 1], [], []>} : vector<64x32xf32>, vector<32x128xf32>, vector<64x128xf32> -> vector<64x128xf32>
    %c2_34 = arith.constant 2 : index
    %c0_35 = arith.constant 0 : index
    %c0_36 = arith.constant 0 : index
    %30 = vector.load %arg3[%c2_34, %c0_35, %c0_36] : memref<3x1x128xf32, #tpu.memory_space<vmem>>, vector<1x1x128xf32>
    %31 = vector.shape_cast %30 : vector<1x1x128xf32> to vector<1x128xf32>
    %32 = vector.broadcast %31 : vector<1x128xf32> to vector<64x128xf32>
    %33 = arith.addf %29, %32 : vector<64x128xf32>
    %34 = vector.shape_cast %33 : vector<64x128xf32> to vector<4x1x16x128xf32>
    %c0_37 = arith.constant 0 : index
    %c2_38 = arith.constant 2 : index
    %c0_39 = arith.constant 0 : index
    %c0_40 = arith.constant 0 : index
    %35 = vector.load %arg7[%c0_37, %c2_38, %c0_39, %c0_40] : memref<4x3x16x128xf32, #tpu.memory_space<vmem>>, vector<4x1x16x128xf32>
    tpu.vector_store %arg7[%c0_37, %c2_38, %c0_39, %c0_40], %34 {strides = array<i32>} : memref<4x3x16x128xf32, #tpu.memory_space<vmem>>, vector<4x1x16x128xf32>,
    %c0_41 = arith.constant 0 : index
    %c0_42 = arith.constant 0 : index
    %c0_43 = arith.constant 0 : index
    %36 = vector.load %arg2[%c0_41, %c0_42, %c0_43] : memref<3x32x128xf32, #tpu.memory_space<vmem>>, vector<3x32x128xf32>
    %cst_44 = arith.constant 0.000000e+00 : f32
    %37 = vector.broadcast %cst_44 : f32 to vector<3x16x32xf32>
    %cst_45 = arith.constant 0.000000e+00 : f32
    %38 = vector.broadcast %cst_45 : f32 to vector<3x16x32xf32>
    %c0_i32 = arith.constant 0 : i32
    %39 = arith.index_cast %c0_i32 : i32 to index
    %c0_46 = arith.constant 0 : index
    %c0_47 = arith.constant 0 : index
    %c0_48 = arith.constant 0 : index
    %40 = vector.load %arg7[%39, %c0_46, %c0_47, %c0_48] : memref<4x3x16x128xf32, #tpu.memory_space<vmem>>, vector<1x3x16x128xf32>
    %41 = vector.shape_cast %40 : vector<1x3x16x128xf32> to vector<3x16x128xf32>
    "tpu.trace_start"() <{level = 10 : i32, message = "fmk,fkn->fmn"}> : () -> ()
    %cst_49 = arith.constant dense<0.000000e+00> : vector<3x16x128xf32>
    %42 = tpu.matmul %37, %36, %cst_49 {dimension_numbers = #tpu.dot_dimension_numbers<[2], [1], [1], [2], [0, 0, 0, 1, 1, 2], [0], [0]>} : vector<3x16x32xf32>, vector<3x32x128xf32>, vector<3x16x128xf32> -> vector<3x16x128xf32>
    "tpu.trace_stop"() : () -> ()
    %43 = arith.addf %41, %42 : vector<3x16x128xf32>
    %44 = vector.extract_strided_slice %43 {offsets = [0, 0, 0], sizes = [3, 16, 96], strides = [1, 1, 1]} : vector<3x16x128xf32> to vector<3x16x96xf32>
    %45 = arith.negf %44 : vector<3x16x96xf32>
    %46 = math.exp %45 : vector<3x16x96xf32>
    %cst_50 = arith.constant 1.000000e+00 : f32
    %47 = vector.broadcast %cst_50 : f32 to vector<3x16x96xf32>
    %48 = arith.addf %47, %46 : vector<3x16x96xf32>
    %49 = arith.divf %47, %48 : vector<3x16x96xf32>
    %50 = vector.extract_strided_slice %43 {offsets = [0, 0, 96], sizes = [3, 16, 32], strides = [1, 1, 1]} : vector<3x16x128xf32> to vector<3x16x32xf32>
    %51 = math.tanh %50 : vector<3x16x32xf32>
    %52 = vector.extract_strided_slice %49 {offsets = [0, 0, 0], sizes = [3, 16, 32], strides = [1, 1, 1]} : vector<3x16x96xf32> to vector<3x16x32xf32>
    %53 = vector.extract_strided_slice %49 {offsets = [0, 0, 32], sizes = [3, 16, 32], strides = [1, 1, 1]} : vector<3x16x96xf32> to vector<3x16x32xf32>
    %54 = vector.extract_strided_slice %49 {offsets = [0, 0, 64], sizes = [3, 16, 32], strides = [1, 1, 1]} : vector<3x16x96xf32> to vector<3x16x32xf32>
    %55 = arith.mulf %53, %38 : vector<3x16x32xf32>
    %56 = arith.mulf %52, %51 : vector<3x16x32xf32>
    %57 = arith.addf %55, %56 : vector<3x16x32xf32>
    %58 = math.tanh %57 : vector<3x16x32xf32>
    %59 = arith.mulf %54, %58 : vector<3x16x32xf32>
    %c1_i32 = arith.constant 1 : i32
    %60 = arith.index_cast %c1_i32 : i32 to index
    %c0_51 = arith.constant 0 : index
    %c0_52 = arith.constant 0 : index
    %c0_53 = arith.constant 0 : index
    %61 = vector.load %arg7[%60, %c0_51, %c0_52, %c0_53] : memref<4x3x16x128xf32, #tpu.memory_space<vmem>>, vector<1x3x16x128xf32>
    %62 = vector.shape_cast %61 : vector<1x3x16x128xf32> to vector<3x16x128xf32>
    "tpu.trace_start"() <{level = 10 : i32, message = "fmk,fkn->fmn"}> : () -> ()
    %cst_54 = arith.constant dense<0.000000e+00> : vector<3x16x128xf32>
    %63 = tpu.matmul %59, %36, %cst_54 {dimension_numbers = #tpu.dot_dimension_numbers<[2], [1], [1], [2], [0, 0, 0, 1, 1, 2], [0], [0]>} : vector<3x16x32xf32>, vector<3x32x128xf32>, vector<3x16x128xf32> -> vector<3x16x128xf32>
    "tpu.trace_stop"() : () -> ()
    %64 = arith.addf %62, %63 : vector<3x16x128xf32>
    %65 = vector.extract_strided_slice %64 {offsets = [0, 0, 0], sizes = [3, 16, 96], strides = [1, 1, 1]} : vector<3x16x128xf32> to vector<3x16x96xf32>
    %66 = arith.negf %65 : vector<3x16x96xf32>
    %67 = math.exp %66 : vector<3x16x96xf32>
    %cst_55 = arith.constant 1.000000e+00 : f32
    %68 = vector.broadcast %cst_55 : f32 to vector<3x16x96xf32>
    %69 = arith.addf %68, %67 : vector<3x16x96xf32>
    %70 = arith.divf %68, %69 : vector<3x16x96xf32>
    %71 = vector.extract_strided_slice %64 {offsets = [0, 0, 96], sizes = [3, 16, 32], strides = [1, 1, 1]} : vector<3x16x128xf32> to vector<3x16x32xf32>
    %72 = math.tanh %71 : vector<3x16x32xf32>
    %73 = vector.extract_strided_slice %70 {offsets = [0, 0, 0], sizes = [3, 16, 32], strides = [1, 1, 1]} : vector<3x16x96xf32> to vector<3x16x32xf32>
    %74 = vector.extract_strided_slice %70 {offsets = [0, 0, 32], sizes = [3, 16, 32], strides = [1, 1, 1]} : vector<3x16x96xf32> to vector<3x16x32xf32>
    %75 = vector.extract_strided_slice %70 {offsets = [0, 0, 64], sizes = [3, 16, 32], strides = [1, 1, 1]} : vector<3x16x96xf32> to vector<3x16x32xf32>
    %76 = arith.mulf %74, %57 : vector<3x16x32xf32>
    %77 = arith.mulf %73, %72 : vector<3x16x32xf32>
    %78 = arith.addf %76, %77 : vector<3x16x32xf32>
    %79 = math.tanh %78 : vector<3x16x32xf32>
    %80 = arith.mulf %75, %79 : vector<3x16x32xf32>
    %c2_i32 = arith.constant 2 : i32
    %81 = arith.index_cast %c2_i32 : i32 to index
    %c0_56 = arith.constant 0 : index
    %c0_57 = arith.constant 0 : index
    %c0_58 = arith.constant 0 : index
    %82 = vector.load %arg7[%81, %c0_56, %c0_57, %c0_58] : memref<4x3x16x128xf32, #tpu.memory_space<vmem>>, vector<1x3x16x128xf32>
    %83 = vector.shape_cast %82 : vector<1x3x16x128xf32> to vector<3x16x128xf32>
    "tpu.trace_start"() <{level = 10 : i32, message = "fmk,fkn->fmn"}> : () -> ()
    %cst_59 = arith.constant dense<0.000000e+00> : vector<3x16x128xf32>
    %84 = tpu.matmul %80, %36, %cst_59 {dimension_numbers = #tpu.dot_dimension_numbers<[2], [1], [1], [2], [0, 0, 0, 1, 1, 2], [0], [0]>} : vector<3x16x32xf32>, vector<3x32x128xf32>, vector<3x16x128xf32> -> vector<3x16x128xf32>
    "tpu.trace_stop"() : () -> ()
    %85 = arith.addf %83, %84 : vector<3x16x128xf32>
    %86 = vector.extract_strided_slice %85 {offsets = [0, 0, 0], sizes = [3, 16, 96], strides = [1, 1, 1]} : vector<3x16x128xf32> to vector<3x16x96xf32>
    %87 = arith.negf %86 : vector<3x16x96xf32>
    %88 = math.exp %87 : vector<3x16x96xf32>
    %cst_60 = arith.constant 1.000000e+00 : f32
    %89 = vector.broadcast %cst_60 : f32 to vector<3x16x96xf32>
    %90 = arith.addf %89, %88 : vector<3x16x96xf32>
    %91 = arith.divf %89, %90 : vector<3x16x96xf32>
    %92 = vector.extract_strided_slice %85 {offsets = [0, 0, 96], sizes = [3, 16, 32], strides = [1, 1, 1]} : vector<3x16x128xf32> to vector<3x16x32xf32>
    %93 = math.tanh %92 : vector<3x16x32xf32>
    %94 = vector.extract_strided_slice %91 {offsets = [0, 0, 0], sizes = [3, 16, 32], strides = [1, 1, 1]} : vector<3x16x96xf32> to vector<3x16x32xf32>
    %95 = vector.extract_strided_slice %91 {offsets = [0, 0, 32], sizes = [3, 16, 32], strides = [1, 1, 1]} : vector<3x16x96xf32> to vector<3x16x32xf32>
    %96 = vector.extract_strided_slice %91 {offsets = [0, 0, 64], sizes = [3, 16, 32], strides = [1, 1, 1]} : vector<3x16x96xf32> to vector<3x16x32xf32>
    %97 = arith.mulf %95, %78 : vector<3x16x32xf32>
    %98 = arith.mulf %94, %93 : vector<3x16x32xf32>
    %99 = arith.addf %97, %98 : vector<3x16x32xf32>
    %100 = math.tanh %99 : vector<3x16x32xf32>
    %101 = arith.mulf %96, %100 : vector<3x16x32xf32>
    %c3_i32 = arith.constant 3 : i32
    %102 = arith.index_cast %c3_i32 : i32 to index
    %c0_61 = arith.constant 0 : index
    %c0_62 = arith.constant 0 : index
    %c0_63 = arith.constant 0 : index
    %103 = vector.load %arg7[%102, %c0_61, %c0_62, %c0_63] : memref<4x3x16x128xf32, #tpu.memory_space<vmem>>, vector<1x3x16x128xf32>
    %104 = vector.shape_cast %103 : vector<1x3x16x128xf32> to vector<3x16x128xf32>
    "tpu.trace_start"() <{level = 10 : i32, message = "fmk,fkn->fmn"}> : () -> ()
    %cst_64 = arith.constant dense<0.000000e+00> : vector<3x16x128xf32>
    %105 = tpu.matmul %101, %36, %cst_64 {dimension_numbers = #tpu.dot_dimension_numbers<[2], [1], [1], [2], [0, 0, 0, 1, 1, 2], [0], [0]>} : vector<3x16x32xf32>, vector<3x32x128xf32>, vector<3x16x128xf32> -> vector<3x16x128xf32>
    "tpu.trace_stop"() : () -> ()
    %106 = arith.addf %104, %105 : vector<3x16x128xf32>
    %107 = vector.extract_strided_slice %106 {offsets = [0, 0, 0], sizes = [3, 16, 96], strides = [1, 1, 1]} : vector<3x16x128xf32> to vector<3x16x96xf32>
    %108 = arith.negf %107 : vector<3x16x96xf32>
    %109 = math.exp %108 : vector<3x16x96xf32>
    %cst_65 = arith.constant 1.000000e+00 : f32
    %110 = vector.broadcast %cst_65 : f32 to vector<3x16x96xf32>
    %111 = arith.addf %110, %109 : vector<3x16x96xf32>
    %112 = arith.divf %110, %111 : vector<3x16x96xf32>
    %113 = vector.extract_strided_slice %106 {offsets = [0, 0, 96], sizes = [3, 16, 32], strides = [1, 1, 1]} : vector<3x16x128xf32> to vector<3x16x32xf32>
    %114 = math.tanh %113 : vector<3x16x32xf32>
    %115 = vector.extract_strided_slice %112 {offsets = [0, 0, 0], sizes = [3, 16, 32], strides = [1, 1, 1]} : vector<3x16x96xf32> to vector<3x16x32xf32>
    %116 = vector.extract_strided_slice %112 {offsets = [0, 0, 32], sizes = [3, 16, 32], strides = [1, 1, 1]} : vector<3x16x96xf32> to vector<3x16x32xf32>
    %117 = vector.extract_strided_slice %112 {offsets = [0, 0, 64], sizes = [3, 16, 32], strides = [1, 1, 1]} : vector<3x16x96xf32> to vector<3x16x32xf32>
    %118 = arith.mulf %116, %99 : vector<3x16x32xf32>
    %119 = arith.mulf %115, %114 : vector<3x16x32xf32>
    %120 = arith.addf %118, %119 : vector<3x16x32xf32>
    %121 = math.tanh %120 : vector<3x16x32xf32>
    %122 = arith.mulf %117, %121 : vector<3x16x32xf32>
    %c4_i32 = arith.constant 4 : i32
    %cst_66 = arith.constant dense<0.000000e+00> : vector<16x32xf32>
    %123 = vector.multi_reduction <add>, %122, %cst_66 [0] : vector<3x16x32xf32> to vector<16x32xf32>
    %cst_67 = arith.constant 3.000000e+00 : f32
    %124 = vector.broadcast %cst_67 : f32 to vector<16x32xf32>
    %125 = arith.divf %123, %124 : vector<16x32xf32>
    %cst_68 = arith.constant dense<0.000000e+00> : vector<32xf32>
    %126 = vector.multi_reduction <add>, %125, %cst_68 [0] : vector<16x32xf32> to vector<32xf32>
    %127 = vector.shape_cast %126 : vector<32xf32> to vector<1x32xf32>
    %cst_69 = arith.constant 1.600000e+01 : f32
    %128 = vector.broadcast %cst_69 : f32 to vector<1x32xf32>
    %129 = arith.divf %127, %128 : vector<1x32xf32>
    %130 = vector.broadcast %129 : vector<1x32xf32> to vector<16x32xf32>
    %131 = arith.subf %125, %130 : vector<16x32xf32>
    %132 = arith.mulf %131, %131 : vector<16x32xf32>
    %cst_70 = arith.constant dense<0.000000e+00> : vector<32xf32>
    %133 = vector.multi_reduction <add>, %132, %cst_70 [0] : vector<16x32xf32> to vector<32xf32>
    %134 = vector.shape_cast %133 : vector<32xf32> to vector<1x32xf32>
    %cst_71 = arith.constant 1.600000e+01 : f32
    %135 = vector.broadcast %cst_71 : f32 to vector<1x32xf32>
    %136 = arith.divf %134, %135 : vector<1x32xf32>
    %137 = vector.broadcast %129 : vector<1x32xf32> to vector<16x32xf32>
    %138 = arith.subf %125, %137 : vector<16x32xf32>
    %cst_72 = arith.constant 9.99999974E-6 : f32
    %139 = vector.broadcast %cst_72 : f32 to vector<1x32xf32>
    %140 = arith.addf %136, %139 : vector<1x32xf32>
    %141 = math.rsqrt %140 : vector<1x32xf32>
    %142 = vector.broadcast %141 : vector<1x32xf32> to vector<16x32xf32>
    %143 = arith.mulf %138, %142 : vector<16x32xf32>
    %c0_73 = arith.constant 0 : index
    %c0_74 = arith.constant 0 : index
    %144 = vector.load %arg4[%c0_73, %c0_74] : memref<1x32xf32, #tpu.memory_space<vmem>>, vector<1x32xf32>
    %145 = vector.broadcast %144 : vector<1x32xf32> to vector<16x32xf32>
    %146 = arith.mulf %143, %145 : vector<16x32xf32>
    %c0_75 = arith.constant 0 : index
    %c0_76 = arith.constant 0 : index
    %147 = vector.load %arg5[%c0_75, %c0_76] : memref<1x32xf32, #tpu.memory_space<vmem>>, vector<1x32xf32>
    %148 = vector.broadcast %147 : vector<1x32xf32> to vector<16x32xf32>
    %149 = arith.addf %146, %148 : vector<16x32xf32>
    %c0_77 = arith.constant 0 : index
    %c0_78 = arith.constant 0 : index
    %150 = vector.load %arg6[%c0_77, %c0_78] : memref<16x32xf32, #tpu.memory_space<vmem>>, vector<16x32xf32>
    tpu.vector_store %arg6[%c0_77, %c0_78], %149 {strides = array<i32>} : memref<16x32xf32, #tpu.memory_space<vmem>>, vector<16x32xf32>,
    return
  }
}

</mosaic_0001>

<llo_original>
// kernel: tpu_custom_call.1
$region0: #{tpu_custom_call.1}
  #allocation0 [shape = 'u32[]', space=smem, size = 0x4, offset = 0x4, fixed_abs, tag = 'smem constant byte address 0x4 - core index']
  #allocation1 [shape = 'u32[144,128]{1,0:T(1,128)}', space=vmem, size = 0x12000, scoped, tag = 'internal scratch']
  #allocation2 [shape = 'f32[4,3,16,128]{3,2,1,0:T(8,128)}', space=vmem, size = 0x18000, scoped, tag = 'scratch operand']
  %s0 = inlined_call_operand.hbm [shape: f32[3,4,16,32], index: 0, kind: input, shape index: {}]
  %s1 = inlined_call_operand.hbm [shape: f32[3,32,128], index: 1, kind: input, shape index: {}]
  %s2 = inlined_call_operand.hbm [shape: f32[3,32,128], index: 2, kind: input, shape index: {}]
  %s3 = inlined_call_operand.vmem [shape: f32[3,1,128], index: 3, kind: input, shape index: {}]
  %s4 = inlined_call_operand.vmem [shape: f32[1,32], index: 4, kind: input, shape index: {}]
  %s5 = inlined_call_operand.vmem [shape: f32[1,32], index: 5, kind: input, shape index: {}]
  %s6 = inlined_call_operand.hbm [shape: f32[16,32], index: 6, kind: output, shape index: {}]
  %s7 = sld [smem:[#allocation0]]
  $region46: #{tpu_custom_call.1} parent=0
    _
  %s9 = ssub.s32 1, %s7
  %s10 = scalar_select 0, %s9, %s7
  $region1: #{tpu_custom_call.1} parent=0
    #allocation3 [shape = 'u8[98304]{0}', space=vmem, size = 0x18000, scoped, tag = 'input window, operand 0, single buffered']
    #allocation4 [shape = 's32[1]{0}', space=sflag, size = 0x4, scoped, tag = 'scoped memory for tpu_custom_call.1']
    #allocation5 [shape = 's32[1]{0}', space=sflag, size = 0x4, scoped, tag = 'scoped memory for tpu_custom_call.1']
    #allocation6 [shape = 'u8[49152]{0}', space=vmem, size = 0xc000, scoped, tag = 'input window, operand 1, single buffered']
    #allocation7 [shape = 's32[1]{0}', space=sflag, size = 0x4, scoped, tag = 'scoped memory for tpu_custom_call.1']
    #allocation8 [shape = 'u8[49152]{0}', space=vmem, size = 0xc000, scoped, tag = 'input window, operand 2, single buffered']
    #allocation9 [shape = 'u8[8192]{0}', space=vmem, size = 0x2000, scoped, tag = 'output window, operand 0, single buffered']
    %11 = vsyncpa [#allocation4], 0
    %12 = vsyncpa [#allocation7], 0
    %13 = vsyncpa [#allocation5], 0
    // Predicated region
    $region2: #{tpu_custom_call.1} parent=1 // pred_check
      _
    $region3: #{tpu_custom_call.1} parent=1 // pred_check_branch
      %15 = sbr.rel (0) target = $region5
    $region4: #{tpu_custom_call.1} parent=1 // pred_region
      %s17 = ssub.s32 3072, 3072
      %18 = vsyncadd [#allocation4], %s17
      %s19 = sshll.u32 [#allocation3], 4
      %s20 = int_to_ptr.vmem [resolvable:$true] %s19
      %25 = dma.hbm_to_vmem [thread:$0]  %s0, 3072, %s20, [#allocation4], 128, 128, 8
    $region5: #{tpu_custom_call.1} parent=1 // pred_fallthru
      _
    // Predicated region
    $region6: #{tpu_custom_call.1} parent=1 // pred_check
      _
    $region7: #{tpu_custom_call.1} parent=1 // pred_check_branch
      %27 = sbr.rel (0) target = $region9
    $region8: #{tpu_custom_call.1} parent=1 // pred_region
      %s29 = ssub.s32 1536, 1536
      %30 = vsyncadd [#allocation7], %s29
      %s31 = sshll.u32 [#allocation6], 4
      %s32 = int_to_ptr.vmem [resolvable:$true] %s31
      %37 = dma.hbm_to_vmem [thread:$0]  %s1, 1536, %s32, [#allocation7], 128, 128, 8
    $region9: #{tpu_custom_call.1} parent=1 // pred_fallthru
      _
    // Predicated region
    $region10: #{tpu_custom_call.1} parent=1 // pred_check
      _
    $region11: #{tpu_custom_call.1} parent=1 // pred_check_branch
      %39 = sbr.rel (0) target = $region13
    $region12: #{tpu_custom_call.1} parent=1 // pred_region
      %s41 = ssub.s32 1536, 1536
      %42 = vsyncadd [#allocation7], %s41
      %s43 = sshll.u32 [#allocation8], 4
      %s44 = int_to_ptr.vmem [resolvable:$true] %s43
      %49 = dma.hbm_to_vmem [thread:$0]  %s2, 1536, %s44, [#allocation7], 128, 128, 8
    $region13: #{tpu_custom_call.1} parent=1 // pred_fallthru
      _
    // Predicated region
    $region14: #{tpu_custom_call.1} parent=1 // pred_check
      _
    $region15: #{tpu_custom_call.1} parent=1 // pred_check_branch
      %51 = sbr.rel (0) target = $region17
    $region16: #{tpu_custom_call.1} parent=1 // pred_region
      _
    $region17: #{tpu_custom_call.1} parent=1 // pred_fallthru
      _
    // Predicated region
    $region18: #{tpu_custom_call.1} parent=1 // pred_check
      _
    $region19: #{tpu_custom_call.1} parent=1 // pred_check_branch
      %53 = sbr.rel (0) target = $region21
    $region20: #{tpu_custom_call.1} parent=1 // pred_region
      _
    $region21: #{tpu_custom_call.1} parent=1 // pred_fallthru
      _
    // Predicated region
    $region22: #{tpu_custom_call.1} parent=1 // pred_check
      _
    $region23: #{tpu_custom_call.1} parent=1 // pred_check_branch
      %55 = sbr.rel (0) target = $region25
    $region24: #{tpu_custom_call.1} parent=1 // pred_region
      _
    $region25: #{tpu_custom_call.1} parent=1 // pred_fallthru
      _
    // Predicated region
    $region26: #{tpu_custom_call.1} parent=1 // pred_check
      _
    $region27: #{tpu_custom_call.1} parent=1 // pred_check_branch
      %57 = sbr.rel (0) target = $region29
    $region28: #{tpu_custom_call.1} parent=1 // pred_region
      %58 = dma.done [#allocation4], 3072
    $region29: #{tpu_custom_call.1} parent=1 // pred_fallthru
      _
    // Predicated region
    $region30: #{tpu_custom_call.1} parent=1 // pred_check
      _
    $region31: #{tpu_custom_call.1} parent=1 // pred_check_branch
      %60 = sbr.rel (0) target = $region33
    $region32: #{tpu_custom_call.1} parent=1 // pred_region
      %61 = dma.done [#allocation7], 1536
    $region33: #{tpu_custom_call.1} parent=1 // pred_fallthru
      _
    // Predicated region
    $region34: #{tpu_custom_call.1} parent=1 // pred_check
      _
    $region35: #{tpu_custom_call.1} parent=1 // pred_check_branch
      %63 = sbr.rel (0) target = $region37
    $region36: #{tpu_custom_call.1} parent=1 // pred_region
      %64 = dma.done [#allocation7], 1536
    $region37: #{tpu_custom_call.1} parent=1 // pred_fallthru
      _
    %v65 = vld [vmem:[#allocation3] sm:$0xff]
    %v66 = vld [vmem:[#allocation3 + $0x8] sm:$0xff]
    %v67 = vld [vmem:[#allocation3 + $0x10] sm:$0xff]
    %v68 = vld [vmem:[#allocation3 + $0x18] sm:$0xff]
    %v69 = vld [vmem:[#allocation3 + $0x20] sm:$0xff]
    %v70 = vld [vmem:[#allocation3 + $0x28] sm:$0xff]
    %v71 = vld [vmem:[#allocation3 + $0x30] sm:$0xff]
    %v72 = vld [vmem:[#allocation3 + $0x38] sm:$0xff]
    %v73 = vld [vmem:[#allocation6] sm:$0xff]
    %v74 = vld [vmem:[#allocation6 + $0x8] sm:$0xff]
    %v75 = vld [vmem:[#allocation6 + $0x10] sm:$0xff]
    %v76 = vld [vmem:[#allocation6 + $0x18] sm:$0xff]
    %v77 = vld [vmem:[%s3] sm:$0x1]
    %v79 = vlaneseq
    %v80 = vshrl.u32 %v79, 7
    %v81 = vsub.s32 0, %v80
    %v82 = vrot.slane %v77, %v81
    %vm84 = vcmask 261120
    %v86 = vsel %vm84, %v65, 0
    %v89 = vsel %vm84, %v66, 0
    %v92 = vsel %vm84, %v67, 0
    %v95 = vsel %vm84, %v68, 0
    %v98 = vsel %vm84, %v69, 0
    %v101 = vsel %vm84, %v70, 0
    %v104 = vsel %vm84, %v71, 0
    %v107 = vsel %vm84, %v72, 0
    %109 = vmatprep.subr.mxu0 0.0
    %110 = vmatpush1.msra.mxu0 0.0
    %111 = vmatprep.subr.mxu0 0.0
    %112 = vmatpush1.msra.mxu0 0.0
    %113 = vmatprep.subr.mxu0 0.0
    %114 = vmatpush1.msra.mxu0 0.0
    %115 = vmatprep.subr.mxu0 0.0
    %116 = vmatpush1.msra.mxu0 0.0
    %117 = vmatprep.subr.mxu0 0.0
    %118 = vmatpush1.msra.mxu0 0.0
    %119 = vmatprep.subr.mxu0 0.0
    %120 = vmatpush1.msra.mxu0 0.0
    %121 = vmatprep.subr.mxu0 0.0
    %122 = vmatpush1.msra.mxu0 0.0
    %123 = vmatprep.subr.mxu0 0.0
    %124 = vmatpush1.msra.mxu0 0.0
    %125 = vmatprep.subr.mxu0 0.0
    %126 = vmatpush1.msra.mxu0 0.0
    %127 = vmatprep.subr.mxu0 0.0
    %128 = vmatpush1.msra.mxu0 0.0
    %129 = vmatprep.subr.mxu0 0.0
    %130 = vmatpush1.msra.mxu0 0.0
    %131 = vmatprep.subr.mxu0 0.0
    %132 = vmatpush1.msra.mxu0 0.0
    %133 = vmatprep.subr.mxu0 0.0
    %134 = vmatpush1.msra.mxu0 %v76
    %135 = vmatprep.subr.mxu0 0.0
    %136 = vmatpush1.msra.mxu0 %v75
    %137 = vmatprep.subr.mxu0 0.0
    %138 = vmatpush1.msra.mxu0 %v74
    %139 = vmatprep.subr.mxu0 0.0
    %140 = vmatpush1.msra.mxu0 %v73
    %141 = vmatprep.subr.mxu0 0.0
    %142 = vmatpush2.msra.mxu0 0.0
    %143 = vmatprep.subr.mxu0 0.0
    %144 = vmatpush2.msra.mxu0 0.0
    %145 = vmatprep.subr.mxu0 0.0
    %146 = vmatpush2.msra.mxu0 0.0
    %147 = vmatprep.subr.mxu0 0.0
    %148 = vmatpush2.msra.mxu0 0.0
    %149 = vmatprep.subr.mxu0 0.0
    %150 = vmatpush2.msra.mxu0 0.0
    %151 = vmatprep.subr.mxu0 0.0
    %152 = vmatpush2.msra.mxu0 0.0
    %153 = vmatprep.subr.mxu0 0.0
    %154 = vmatpush2.msra.mxu0 0.0
    %155 = vmatprep.subr.mxu0 0.0
    %156 = vmatpush2.msra.mxu0 0.0
    %157 = vmatprep.subr.mxu0 0.0
    %158 = vmatpush2.msra.mxu0 0.0
    %159 = vmatprep.subr.mxu0 0.0
    %160 = vmatpush2.msra.mxu0 0.0
    %161 = vmatprep.subr.mxu0 0.0
    %162 = vmatpush2.msra.mxu0 0.0
    %163 = vmatprep.subr.mxu0 0.0
    %164 = vmatpush2.msra.mxu0 0.0
    %165 = vmatprep.subr.mxu0 0.0
    %166 = vmatpush2.msra.mxu0 0.0
    %167 = vmatprep.subr.mxu0 0.0
    %168 = vmatpush2.msra.mxu0 0.0
    %169 = vmatprep.subr.mxu0 0.0
    %170 = vmatpush2.msra.mxu0 0.0
    %171 = vmatprep.subr.mxu0 0.0
    %172 = vmatpush2.msra.mxu0 0.0
    %173 = vmatprep.mubr.f32.mxu0 0.0
    %174 = vmatmul.mubr.f32.gmra.mxu0 %v86
    %v175 = vpop.f32.mrf.mxu0
    %v176 = vadd.f32 %v82, %v175
    %v177 = vpop.f32.mrf.mxu0
    %178 = vmatprep.mubr.f32.mxu0 0.0
    %179 = vmatmul.mubr.f32.gmra.mxu0 %v89
    %v180 = vpop.f32.mrf.mxu0
    %v181 = vadd.f32 %v82, %v180
    %v182 = vpop.f32.mrf.mxu0
    %183 = vmatprep.mubr.f32.mxu0 0.0
    %184 = vmatmul.mubr.f32.gmra.mxu0 %v92
    %v185 = vpop.f32.mrf.mxu0
    %v186 = vadd.f32 %v82, %v185
    %v187 = vpop.f32.mrf.mxu0
    %188 = vmatprep.mubr.f32.mxu0 0.0
    %189 = vmatmul.mubr.f32.gmra.mxu0 %v95
    %v190 = vpop.f32.mrf.mxu0
    %v191 = vadd.f32 %v82, %v190
    %v192 = vpop.f32.mrf.mxu0
    %193 = vmatprep.mubr.f32.mxu0 0.0
    %194 = vmatmul.mubr.f32.gmra.mxu0 %v98
    %v195 = vpop.f32.mrf.mxu0
    %v196 = vadd.f32 %v82, %v195
    %v197 = vpop.f32.mrf.mxu0
    %198 = vmatprep.mubr.f32.mxu0 0.0
    %199 = vmatmul.mubr.f32.gmra.mxu0 %v101
    %v200 = vpop.f32.mrf.mxu0
    %v201 = vadd.f32 %v82, %v200
    %v202 = vpop.f32.mrf.mxu0
    %203 = vmatprep.mubr.f32.mxu0 0.0
    %204 = vmatmul.mubr.f32.gmra.mxu0 %v104
    %v205 = vpop.f32.mrf.mxu0
    %v206 = vadd.f32 %v82, %v205
    %v207 = vpop.f32.mrf.mxu0
    %208 = vmatprep.mubr.f32.mxu0 0.0
    %209 = vmatmul.mubr.f32.gmra.mxu0 %v107
    %v210 = vpop.f32.mrf.mxu0
    %v211 = vadd.f32 %v82, %v210
    %v212 = vpop.f32.mrf.mxu0
    %213 = vdwg.mxu0
    %214 = vst [vmem:[#allocation2] sm:$0xff] %v176
    %215 = vst [vmem:[#allocation2 + $0x8] sm:$0xff] %v181
    %216 = vst [vmem:[#allocation2 + $0x30] sm:$0xff] %v186
    %217 = vst [vmem:[#allocation2 + $0x38] sm:$0xff] %v191
    %218 = vst [vmem:[#allocation2 + $0x60] sm:$0xff] %v196
    %219 = vst [vmem:[#allocation2 + $0x68] sm:$0xff] %v201
    %220 = vst [vmem:[#allocation2 + $0x90] sm:$0xff] %v206
    %221 = vst [vmem:[#allocation2 + $0x98] sm:$0xff] %v211
    %s222 = scalar_lea.vmem [#allocation3], 64
    %v223 = vld [vmem:[%s222] sm:$0xff]
    %v224 = vld [vmem:[%s222 + $0x8] sm:$0xff]
    %v225 = vld [vmem:[%s222 + $0x10] sm:$0xff]
    %v226 = vld [vmem:[%s222 + $0x18] sm:$0xff]
    %v227 = vld [vmem:[%s222 + $0x20] sm:$0xff]
    %v228 = vld [vmem:[%s222 + $0x28] sm:$0xff]
    %v229 = vld [vmem:[%s222 + $0x30] sm:$0xff]
    %v230 = vld [vmem:[%s222 + $0x38] sm:$0xff]
    %s231 = scalar_lea.vmem [#allocation6], 32
    %v232 = vld [vmem:[%s231] sm:$0xff]
    %v233 = vld [vmem:[%s231 + $0x8] sm:$0xff]
    %v234 = vld [vmem:[%s231 + $0x10] sm:$0xff]
    %v235 = vld [vmem:[%s231 + $0x18] sm:$0xff]
    %s236 = scalar_lea.vmem %s3, 1
    %v237 = vld [vmem:[%s236] sm:$0x1]
    %v239 = vlaneseq
    %v240 = vshrl.u32 %v239, 7
    %v241 = vsub.s32 0, %v240
    %v242 = vrot.slane %v237, %v241
    %v245 = vsel %vm84, %v223, 0
    %v248 = vsel %vm84, %v224, 0
    %v251 = vsel %vm84, %v225, 0
    %v254 = vsel %vm84, %v226, 0
    %v257 = vsel %vm84, %v227, 0
    %v260 = vsel %vm84, %v228, 0
    %v263 = vsel %vm84, %v229, 0
    %v266 = vsel %vm84, %v230, 0
    %268 = vmatprep.subr.mxu0 0.0
    %269 = vmatpush1.msra.mxu0 0.0
    %270 = vmatprep.subr.mxu0 0.0
    %271 = vmatpush1.msra.mxu0 0.0
    %272 = vmatprep.subr.mxu0 0.0
    %273 = vmatpush1.msra.mxu0 0.0
    %274 = vmatprep.subr.mxu0 0.0
    %275 = vmatpush1.msra.mxu0 0.0
    %276 = vmatprep.subr.mxu0 0.0
    %277 = vmatpush1.msra.mxu0 0.0
    %278 = vmatprep.subr.mxu0 0.0
    %279 = vmatpush1.msra.mxu0 0.0
    %280 = vmatprep.subr.mxu0 0.0
    %281 = vmatpush1.msra.mxu0 0.0
    %282 = vmatprep.subr.mxu0 0.0
    %283 = vmatpush1.msra.mxu0 0.0
    %284 = vmatprep.subr.mxu0 0.0
    %285 = vmatpush1.msra.mxu0 0.0
    %286 = vmatprep.subr.mxu0 0.0
    %287 = vmatpush1.msra.mxu0 0.0
    %288 = vmatprep.subr.mxu0 0.0
    %289 = vmatpush1.msra.mxu0 0.0
    %290 = vmatprep.subr.mxu0 0.0
    %291 = vmatpush1.msra.mxu0 0.0
    %292 = vmatprep.subr.mxu0 0.0
    %293 = vmatpush1.msra.mxu0 %v235
    %294 = vmatprep.subr.mxu0 0.0
    %295 = vmatpush1.msra.mxu0 %v234
    %296 = vmatprep.subr.mxu0 0.0
    %297 = vmatpush1.msra.mxu0 %v233
    %298 = vmatprep.subr.mxu0 0.0
    %299 = vmatpush1.msra.mxu0 %v232
    %300 = vmatprep.subr.mxu0 0.0
    %301 = vmatpush2.msra.mxu0 0.0
    %302 = vmatprep.subr.mxu0 0.0
    %303 = vmatpush2.msra.mxu0 0.0
    %304 = vmatprep.subr.mxu0 0.0
    %305 = vmatpush2.msra.mxu0 0.0
    %306 = vmatprep.subr.mxu0 0.0
    %307 = vmatpush2.msra.mxu0 0.0
    %308 = vmatprep.subr.mxu0 0.0
    %309 = vmatpush2.msra.mxu0 0.0
    %310 = vmatprep.subr.mxu0 0.0
    %311 = vmatpush2.msra.mxu0 0.0
    %312 = vmatprep.subr.mxu0 0.0
    %313 = vmatpush2.msra.mxu0 0.0
    %314 = vmatprep.subr.mxu0 0.0
    %315 = vmatpush2.msra.mxu0 0.0
    %316 = vmatprep.subr.mxu0 0.0
    %317 = vmatpush2.msra.mxu0 0.0
    %318 = vmatprep.subr.mxu0 0.0
    %319 = vmatpush2.msra.mxu0 0.0
    %320 = vmatprep.subr.mxu0 0.0
    %321 = vmatpush2.msra.mxu0 0.0
    %322 = vmatprep.subr.mxu0 0.0
    %323 = vmatpush2.msra.mxu0 0.0
    %324 = vmatprep.subr.mxu0 0.0
    %325 = vmatpush2.msra.mxu0 0.0
    %326 = vmatprep.subr.mxu0 0.0
    %327 = vmatpush2.msra.mxu0 0.0
    %328 = vmatprep.subr.mxu0 0.0
    %329 = vmatpush2.msra.mxu0 0.0
    %330 = vmatprep.subr.mxu0 0.0
    %331 = vmatpush2.msra.mxu0 0.0
    %332 = vmatprep.mubr.f32.mxu0 0.0
    %333 = vmatmul.mubr.f32.gmra.mxu0 %v245
    %v334 = vpop.f32.mrf.mxu0
    %v335 = vadd.f32 %v242, %v334
    %v336 = vpop.f32.mrf.mxu0
    %337 = vmatprep.mubr.f32.mxu0 0.0
    %338 = vmatmul.mubr.f32.gmra.mxu0 %v248
    %v339 = vpop.f32.mrf.mxu0
    %v340 = vadd.f32 %v242, %v339
    %v341 = vpop.f32.mrf.mxu0
    %342 = vmatprep.mubr.f32.mxu0 0.0
    %343 = vmatmul.mubr.f32.gmra.mxu0 %v251
    %v344 = vpop.f32.mrf.mxu0
    %v345 = vadd.f32 %v242, %v344
    %v346 = vpop.f32.mrf.mxu0
    %347 = vmatprep.mubr.f32.mxu0 0.0
    %348 = vmatmul.mubr.f32.gmra.mxu0 %v254
    %v349 = vpop.f32.mrf.mxu0
    %v350 = vadd.f32 %v242, %v349
    %v351 = vpop.f32.mrf.mxu0
    %352 = vmatprep.mubr.f32.mxu0 0.0
    %353 = vmatmul.mubr.f32.gmra.mxu0 %v257
    %v354 = vpop.f32.mrf.mxu0
    %v355 = vadd.f32 %v242, %v354
    %v356 = vpop.f32.mrf.mxu0
    %357 = vmatprep.mubr.f32.mxu0 0.0
    %358 = vmatmul.mubr.f32.gmra.mxu0 %v260
    %v359 = vpop.f32.mrf.mxu0
    %v360 = vadd.f32 %v242, %v359
    %v361 = vpop.f32.mrf.mxu0
    %362 = vmatprep.mubr.f32.mxu0 0.0
    %363 = vmatmul.mubr.f32.gmra.mxu0 %v263
    %v364 = vpop.f32.mrf.mxu0
    %v365 = vadd.f32 %v242, %v364
    %v366 = vpop.f32.mrf.mxu0
    %367 = vmatprep.mubr.f32.mxu0 0.0
    %368 = vmatmul.mubr.f32.gmra.mxu0 %v266
    %v369 = vpop.f32.mrf.mxu0
    %v370 = vadd.f32 %v242, %v369
    %v371 = vpop.f32.mrf.mxu0
    %372 = vdwg.mxu0
    %s373 = scalar_lea.vmem [#allocation2], 16
    %374 = vst [vmem:[%s373] sm:$0xff] %v335
    %375 = vst [vmem:[%s373 + $0x8] sm:$0xff] %v340
    %376 = vst [vmem:[%s373 + $0x30] sm:$0xff] %v345
    %377 = vst [vmem:[%s373 + $0x38] sm:$0xff] %v350
    %378 = vst [vmem:[%s373 + $0x60] sm:$0xff] %v355
    %379 = vst [vmem:[%s373 + $0x68] sm:$0xff] %v360
    %380 = vst [vmem:[%s373 + $0x90] sm:$0xff] %v365
    %381 = vst [vmem:[%s373 + $0x98] sm:$0xff] %v370
    %s382 = scalar_lea.vmem [#allocation3], 128
    %v383 = vld [vmem:[%s382] sm:$0xff]
    %v384 = vld [vmem:[%s382 + $0x8] sm:$0xff]
    %v385 = vld [vmem:[%s382 + $0x10] sm:$0xff]
    %v386 = vld [vmem:[%s382 + $0x18] sm:$0xff]
    %v387 = vld [vmem:[%s382 + $0x20] sm:$0xff]
    %v388 = vld [vmem:[%s382 + $0x28] sm:$0xff]
    %v389 = vld [vmem:[%s382 + $0x30] sm:$0xff]
    %v390 = vld [vmem:[%s382 + $0x38] sm:$0xff]
    %s391 = scalar_lea.vmem [#allocation6], 64
    %v392 = vld [vmem:[%s391] sm:$0xff]
    %v393 = vld [vmem:[%s391 + $0x8] sm:$0xff]
    %v394 = vld [vmem:[%s391 + $0x10] sm:$0xff]
    %v395 = vld [vmem:[%s391 + $0x18] sm:$0xff]
    %s396 = scalar_lea.vmem %s3, 2
    %v397 = vld [vmem:[%s396] sm:$0x1]
    %v399 = vlaneseq
    %v400 = vshrl.u32 %v399, 7
    %v401 = vsub.s32 0, %v400
    %v402 = vrot.slane %v397, %v401
    %v405 = vsel %vm84, %v383, 0
    %v408 = vsel %vm84, %v384, 0
    %v411 = vsel %vm84, %v385, 0
    %v414 = vsel %vm84, %v386, 0
    %v417 = vsel %vm84, %v387, 0
    %v420 = vsel %vm84, %v388, 0
    %v423 = vsel %vm84, %v389, 0
    %v426 = vsel %vm84, %v390, 0
    %428 = vmatprep.subr.mxu0 0.0
    %429 = vmatpush1.msra.mxu0 0.0
    %430 = vmatprep.subr.mxu0 0.0
    %431 = vmatpush1.msra.mxu0 0.0
    %432 = vmatprep.subr.mxu0 0.0
    %433 = vmatpush1.msra.mxu0 0.0
    %434 = vmatprep.subr.mxu0 0.0
    %435 = vmatpush1.msra.mxu0 0.0
    %436 = vmatprep.subr.mxu0 0.0
    %437 = vmatpush1.msra.mxu0 0.0
    %438 = vmatprep.subr.mxu0 0.0
    %439 = vmatpush1.msra.mxu0 0.0
    %440 = vmatprep.subr.mxu0 0.0
    %441 = vmatpush1.msra.mxu0 0.0
    %442 = vmatprep.subr.mxu0 0.0
    %443 = vmatpush1.msra.mxu0 0.0
    %444 = vmatprep.subr.mxu0 0.0
    %445 = vmatpush1.msra.mxu0 0.0
    %446 = vmatprep.subr.mxu0 0.0
    %447 = vmatpush1.msra.mxu0 0.0
    %448 = vmatprep.subr.mxu0 0.0
    %449 = vmatpush1.msra.mxu0 0.0
    %450 = vmatprep.subr.mxu0 0.0
    %451 = vmatpush1.msra.mxu0 0.0
    %452 = vmatprep.subr.mxu0 0.0
    %453 = vmatpush1.msra.mxu0 %v395
    %454 = vmatprep.subr.mxu0 0.0
    %455 = vmatpush1.msra.mxu0 %v394
    %456 = vmatprep.subr.mxu0 0.0
    %457 = vmatpush1.msra.mxu0 %v393
    %458 = vmatprep.subr.mxu0 0.0
    %459 = vmatpush1.msra.mxu0 %v392
    %460 = vmatprep.subr.mxu0 0.0
    %461 = vmatpush2.msra.mxu0 0.0
    %462 = vmatprep.subr.mxu0 0.0
    %463 = vmatpush2.msra.mxu0 0.0
    %464 = vmatprep.subr.mxu0 0.0
    %465 = vmatpush2.msra.mxu0 0.0
    %466 = vmatprep.subr.mxu0 0.0
    %467 = vmatpush2.msra.mxu0 0.0
    %468 = vmatprep.subr.mxu0 0.0
    %469 = vmatpush2.msra.mxu0 0.0
    %470 = vmatprep.subr.mxu0 0.0
    %471 = vmatpush2.msra.mxu0 0.0
    %472 = vmatprep.subr.mxu0 0.0
    %473 = vmatpush2.msra.mxu0 0.0
    %474 = vmatprep.subr.mxu0 0.0
    %475 = vmatpush2.msra.mxu0 0.0
    %476 = vmatprep.subr.mxu0 0.0
    %477 = vmatpush2.msra.mxu0 0.0
    %478 = vmatprep.subr.mxu0 0.0
    %479 = vmatpush2.msra.mxu0 0.0
    %480 = vmatprep.subr.mxu0 0.0
    %481 = vmatpush2.msra.mxu0 0.0
    %482 = vmatprep.subr.mxu0 0.0
    %483 = vmatpush2.msra.mxu0 0.0
    %484 = vmatprep.subr.mxu0 0.0
    %485 = vmatpush2.msra.mxu0 0.0
    %486 = vmatprep.subr.mxu0 0.0
    %487 = vmatpush2.msra.mxu0 0.0
    %488 = vmatprep.subr.mxu0 0.0
    %489 = vmatpush2.msra.mxu0 0.0
    %490 = vmatprep.subr.mxu0 0.0
    %491 = vmatpush2.msra.mxu0 0.0
    %492 = vmatprep.mubr.f32.mxu0 0.0
    %493 = vmatmul.mubr.f32.gmra.mxu0 %v405
    %v494 = vpop.f32.mrf.mxu0
    %v495 = vadd.f32 %v402, %v494
    %v496 = vpop.f32.mrf.mxu0
    %497 = vmatprep.mubr.f32.mxu0 0.0
    %498 = vmatmul.mubr.f32.gmra.mxu0 %v408
    %v499 = vpop.f32.mrf.mxu0
    %v500 = vadd.f32 %v402, %v499
    %v501 = vpop.f32.mrf.mxu0
    %502 = vmatprep.mubr.f32.mxu0 0.0
    %503 = vmatmul.mubr.f32.gmra.mxu0 %v411
    %v504 = vpop.f32.mrf.mxu0
    %v505 = vadd.f32 %v402, %v504
    %v506 = vpop.f32.mrf.mxu0
    %507 = vmatprep.mubr.f32.mxu0 0.0
    %508 = vmatmul.mubr.f32.gmra.mxu0 %v414
    %v509 = vpop.f32.mrf.mxu0
    %v510 = vadd.f32 %v402, %v509
    %v511 = vpop.f32.mrf.mxu0
    %512 = vmatprep.mubr.f32.mxu0 0.0
    %513 = vmatmul.mubr.f32.gmra.mxu0 %v417
    %v514 = vpop.f32.mrf.mxu0
    %v515 = vadd.f32 %v402, %v514
    %v516 = vpop.f32.mrf.mxu0
    %517 = vmatprep.mubr.f32.mxu0 0.0
    %518 = vmatmul.mubr.f32.gmra.mxu0 %v420
    %v519 = vpop.f32.mrf.mxu0
    %v520 = vadd.f32 %v402, %v519
    %v521 = vpop.f32.mrf.mxu0
    %522 = vmatprep.mubr.f32.mxu0 0.0
    %523 = vmatmul.mubr.f32.gmra.mxu0 %v423
    %v524 = vpop.f32.mrf.mxu0
    %v525 = vadd.f32 %v402, %v524
    %v526 = vpop.f32.mrf.mxu0
    %527 = vmatprep.mubr.f32.mxu0 0.0
    %528 = vmatmul.mubr.f32.gmra.mxu0 %v426
    %v529 = vpop.f32.mrf.mxu0
    %v530 = vadd.f32 %v402, %v529
    %v531 = vpop.f32.mrf.mxu0
    %532 = vdwg.mxu0
    %s533 = scalar_lea.vmem [#allocation2], 32
    %534 = vst [vmem:[%s533] sm:$0xff] %v495
    %535 = vst [vmem:[%s533 + $0x8] sm:$0xff] %v500
    %536 = vst [vmem:[%s533 + $0x30] sm:$0xff] %v505
    %537 = vst [vmem:[%s533 + $0x38] sm:$0xff] %v510
    %538 = vst [vmem:[%s533 + $0x60] sm:$0xff] %v515
    %539 = vst [vmem:[%s533 + $0x68] sm:$0xff] %v520
    %540 = vst [vmem:[%s533 + $0x90] sm:$0xff] %v525
    %541 = vst [vmem:[%s533 + $0x98] sm:$0xff] %v530
    %v542 = vld [vmem:[#allocation8] sm:$0xff]
    %v543 = vld [vmem:[#allocation8 + $0x8] sm:$0xff]
    %v544 = vld [vmem:[#allocation8 + $0x10] sm:$0xff]
    %v545 = vld [vmem:[#allocation8 + $0x18] sm:$0xff]
    %v546 = vld [vmem:[#allocation8 + $0x20] sm:$0xff]
    %v547 = vld [vmem:[#allocation8 + $0x28] sm:$0xff]
    %v548 = vld [vmem:[#allocation8 + $0x30] sm:$0xff]
    %v549 = vld [vmem:[#allocation8 + $0x38] sm:$0xff]
    %v550 = vld [vmem:[#allocation8 + $0x40] sm:$0xff]
    %v551 = vld [vmem:[#allocation8 + $0x48] sm:$0xff]
    %v552 = vld [vmem:[#allocation8 + $0x50] sm:$0xff]
    %v553 = vld [vmem:[#allocation8 + $0x58] sm:$0xff]
    %v554 = vld [vmem:[#allocation2] sm:$0xff]
    %v555 = vld [vmem:[#allocation2 + $0x8] sm:$0xff]
    %v556 = vld [vmem:[#allocation2 + $0x10] sm:$0xff]
    %v557 = vld [vmem:[#allocation2 + $0x18] sm:$0xff]
    %v558 = vld [vmem:[#allocation2 + $0x20] sm:$0xff]
    %v559 = vld [vmem:[#allocation2 + $0x28] sm:$0xff]
    %v561 = vsel %vm84, 0.0, 0
    %563 = vmatprep.subr.mxu0 0.0
    %564 = vmatpush1.msra.mxu0 0.0
    %565 = vmatprep.subr.mxu0 0.0
    %566 = vmatpush1.msra.mxu0 0.0
    %567 = vmatprep.subr.mxu0 0.0
    %568 = vmatpush1.msra.mxu0 0.0
    %569 = vmatprep.subr.mxu0 0.0
    %570 = vmatpush1.msra.mxu0 0.0
    %571 = vmatprep.subr.mxu0 0.0
    %572 = vmatpush1.msra.mxu0 0.0
    %573 = vmatprep.subr.mxu0 0.0
    %574 = vmatpush1.msra.mxu0 0.0
    %575 = vmatprep.subr.mxu0 0.0
    %576 = vmatpush1.msra.mxu0 0.0
    %577 = vmatprep.subr.mxu0 0.0
    %578 = vmatpush1.msra.mxu0 0.0
    %579 = vmatprep.subr.mxu0 0.0
    %580 = vmatpush1.msra.mxu0 0.0
    %581 = vmatprep.subr.mxu0 0.0
    %582 = vmatpush1.msra.mxu0 0.0
    %583 = vmatprep.subr.mxu0 0.0
    %584 = vmatpush1.msra.mxu0 0.0
    %585 = vmatprep.subr.mxu0 0.0
    %586 = vmatpush1.msra.mxu0 0.0
    %587 = vmatprep.subr.mxu0 0.0
    %588 = vmatpush1.msra.mxu0 %v545
    %589 = vmatprep.subr.mxu0 0.0
    %590 = vmatpush1.msra.mxu0 %v544
    %591 = vmatprep.subr.mxu0 0.0
    %592 = vmatpush1.msra.mxu0 %v543
    %593 = vmatprep.subr.mxu0 0.0
    %594 = vmatpush1.msra.mxu0 %v542
    %595 = vmatprep.subr.mxu0 0.0
    %596 = vmatpush2.msra.mxu0 0.0
    %597 = vmatprep.subr.mxu0 0.0
    %598 = vmatpush2.msra.mxu0 0.0
    %599 = vmatprep.subr.mxu0 0.0
    %600 = vmatpush2.msra.mxu0 0.0
    %601 = vmatprep.subr.mxu0 0.0
    %602 = vmatpush2.msra.mxu0 0.0
    %603 = vmatprep.subr.mxu0 0.0
    %604 = vmatpush2.msra.mxu0 0.0
    %605 = vmatprep.subr.mxu0 0.0
    %606 = vmatpush2.msra.mxu0 0.0
    %607 = vmatprep.subr.mxu0 0.0
    %608 = vmatpush2.msra.mxu0 0.0
    %609 = vmatprep.subr.mxu0 0.0
    %610 = vmatpush2.msra.mxu0 0.0
    %611 = vmatprep.subr.mxu0 0.0
    %612 = vmatpush2.msra.mxu0 0.0
    %613 = vmatprep.subr.mxu0 0.0
    %614 = vmatpush2.msra.mxu0 0.0
    %615 = vmatprep.subr.mxu0 0.0
    %616 = vmatpush2.msra.mxu0 0.0
    %617 = vmatprep.subr.mxu0 0.0
    %618 = vmatpush2.msra.mxu0 0.0
    %619 = vmatprep.subr.mxu0 0.0
    %620 = vmatpush2.msra.mxu0 0.0
    %621 = vmatprep.subr.mxu0 0.0
    %622 = vmatpush2.msra.mxu0 0.0
    %623 = vmatprep.subr.mxu0 0.0
    %624 = vmatpush2.msra.mxu0 0.0
    %625 = vmatprep.subr.mxu0 0.0
    %626 = vmatpush2.msra.mxu0 0.0
    %627 = vmatprep.mubr.f32.mxu0 0.0
    %628 = vmatmul.mubr.f32.gmra.mxu0 %v561
    %v629 = vpop.f32.mrf.mxu0
    %v630 = vadd.f32 0.0, %v629
    %v631 = vpop.f32.mrf.mxu0
    %632 = vmatprep.mubr.f32.mxu0 0.0
    %633 = vmatmul.mubr.f32.gmra.mxu0 %v561
    %v634 = vpop.f32.mrf.mxu0
    %v635 = vadd.f32 0.0, %v634
    %v636 = vpop.f32.mrf.mxu0
    %637 = vdwg.mxu0
    %638 = vmatprep.subr.mxu0 0.0
    %639 = vmatpush1.msra.mxu0 0.0
    %640 = vmatprep.subr.mxu0 0.0
    %641 = vmatpush1.msra.mxu0 0.0
    %642 = vmatprep.subr.mxu0 0.0
    %643 = vmatpush1.msra.mxu0 0.0
    %644 = vmatprep.subr.mxu0 0.0
    %645 = vmatpush1.msra.mxu0 0.0
    %646 = vmatprep.subr.mxu0 0.0
    %647 = vmatpush1.msra.mxu0 0.0
    %648 = vmatprep.subr.mxu0 0.0
    %649 = vmatpush1.msra.mxu0 0.0
    %650 = vmatprep.subr.mxu0 0.0
    %651 = vmatpush1.msra.mxu0 0.0
    %652 = vmatprep.subr.mxu0 0.0
    %653 = vmatpush1.msra.mxu0 0.0
    %654 = vmatprep.subr.mxu0 0.0
    %655 = vmatpush1.msra.mxu0 0.0
    %656 = vmatprep.subr.mxu0 0.0
    %657 = vmatpush1.msra.mxu0 0.0
    %658 = vmatprep.subr.mxu0 0.0
    %659 = vmatpush1.msra.mxu0 0.0
    %660 = vmatprep.subr.mxu0 0.0
    %661 = vmatpush1.msra.mxu0 0.0
    %662 = vmatprep.subr.mxu0 0.0
    %663 = vmatpush1.msra.mxu0 %v549
    %664 = vmatprep.subr.mxu0 0.0
    %665 = vmatpush1.msra.mxu0 %v548
    %666 = vmatprep.subr.mxu0 0.0
    %667 = vmatpush1.msra.mxu0 %v547
    %668 = vmatprep.subr.mxu0 0.0
    %669 = vmatpush1.msra.mxu0 %v546
    %670 = vmatprep.subr.mxu0 0.0
    %671 = vmatpush2.msra.mxu0 0.0
    %672 = vmatprep.subr.mxu0 0.0
    %673 = vmatpush2.msra.mxu0 0.0
    %674 = vmatprep.subr.mxu0 0.0
    %675 = vmatpush2.msra.mxu0 0.0
    %676 = vmatprep.subr.mxu0 0.0
    %677 = vmatpush2.msra.mxu0 0.0
    %678 = vmatprep.subr.mxu0 0.0
    %679 = vmatpush2.msra.mxu0 0.0
    %680 = vmatprep.subr.mxu0 0.0
    %681 = vmatpush2.msra.mxu0 0.0
    %682 = vmatprep.subr.mxu0 0.0
    %683 = vmatpush2.msra.mxu0 0.0
    %684 = vmatprep.subr.mxu0 0.0
    %685 = vmatpush2.msra.mxu0 0.0
    %686 = vmatprep.subr.mxu0 0.0
    %687 = vmatpush2.msra.mxu0 0.0
    %688 = vmatprep.subr.mxu0 0.0
    %689 = vmatpush2.msra.mxu0 0.0
    %690 = vmatprep.subr.mxu0 0.0
    %691 = vmatpush2.msra.mxu0 0.0
    %692 = vmatprep.subr.mxu0 0.0
    %693 = vmatpush2.msra.mxu0 0.0
    %694 = vmatprep.subr.mxu0 0.0
    %695 = vmatpush2.msra.mxu0 0.0
    %696 = vmatprep.subr.mxu0 0.0
    %697 = vmatpush2.msra.mxu0 0.0
    %698 = vmatprep.subr.mxu0 0.0
    %699 = vmatpush2.msra.mxu0 0.0
    %700 = vmatprep.subr.mxu0 0.0
    %701 = vmatpush2.msra.mxu0 0.0
    %702 = vmatprep.mubr.f32.mxu0 0.0
    %703 = vmatmul.mubr.f32.gmra.mxu0 %v561
    %v704 = vpop.f32.mrf.mxu0
    %v705 = vadd.f32 0.0, %v704
    %v706 = vpop.f32.mrf.mxu0
    %707 = vmatprep.mubr.f32.mxu0 0.0
    %708 = vmatmul.mubr.f32.gmra.mxu0 %v561
    %v709 = vpop.f32.mrf.mxu0
    %v710 = vadd.f32 0.0, %v709
    %v711 = vpop.f32.mrf.mxu0
    %712 = vdwg.mxu0
    %713 = vmatprep.subr.mxu0 0.0
    %714 = vmatpush1.msra.mxu0 0.0
    %715 = vmatprep.subr.mxu0 0.0
    %716 = vmatpush1.msra.mxu0 0.0
    %717 = vmatprep.subr.mxu0 0.0
    %718 = vmatpush1.msra.mxu0 0.0
    %719 = vmatprep.subr.mxu0 0.0
    %720 = vmatpush1.msra.mxu0 0.0
    %721 = vmatprep.subr.mxu0 0.0
    %722 = vmatpush1.msra.mxu0 0.0
    %723 = vmatprep.subr.mxu0 0.0
    %724 = vmatpush1.msra.mxu0 0.0
    %725 = vmatprep.subr.mxu0 0.0
    %726 = vmatpush1.msra.mxu0 0.0
    %727 = vmatprep.subr.mxu0 0.0
    %728 = vmatpush1.msra.mxu0 0.0
    %729 = vmatprep.subr.mxu0 0.0
    %730 = vmatpush1.msra.mxu0 0.0
    %731 = vmatprep.subr.mxu0 0.0
    %732 = vmatpush1.msra.mxu0 0.0
    %733 = vmatprep.subr.mxu0 0.0
    %734 = vmatpush1.msra.mxu0 0.0
    %735 = vmatprep.subr.mxu0 0.0
    %736 = vmatpush1.msra.mxu0 0.0
    %737 = vmatprep.subr.mxu0 0.0
    %738 = vmatpush1.msra.mxu0 %v553
    %739 = vmatprep.subr.mxu0 0.0
    %740 = vmatpush1.msra.mxu0 %v552
    %741 = vmatprep.subr.mxu0 0.0
    %742 = vmatpush1.msra.mxu0 %v551
    %743 = vmatprep.subr.mxu0 0.0
    %744 = vmatpush1.msra.mxu0 %v550
    %745 = vmatprep.subr.mxu0 0.0
    %746 = vmatpush2.msra.mxu0 0.0
    %747 = vmatprep.subr.mxu0 0.0
    %748 = vmatpush2.msra.mxu0 0.0
    %749 = vmatprep.subr.mxu0 0.0
    %750 = vmatpush2.msra.mxu0 0.0
    %751 = vmatprep.subr.mxu0 0.0
    %752 = vmatpush2.msra.mxu0 0.0
    %753 = vmatprep.subr.mxu0 0.0
    %754 = vmatpush2.msra.mxu0 0.0
    %755 = vmatprep.subr.mxu0 0.0
    %756 = vmatpush2.msra.mxu0 0.0
    %757 = vmatprep.subr.mxu0 0.0
    %758 = vmatpush2.msra.mxu0 0.0
    %759 = vmatprep.subr.mxu0 0.0
    %760 = vmatpush2.msra.mxu0 0.0
    %761 = vmatprep.subr.mxu0 0.0
    %762 = vmatpush2.msra.mxu0 0.0
    %763 = vmatprep.subr.mxu0 0.0
    %764 = vmatpush2.msra.mxu0 0.0
    %765 = vmatprep.subr.mxu0 0.0
    %766 = vmatpush2.msra.mxu0 0.0
    %767 = vmatprep.subr.mxu0 0.0
    %768 = vmatpush2.msra.mxu0 0.0
    %769 = vmatprep.subr.mxu0 0.0
    %770 = vmatpush2.msra.mxu0 0.0
    %771 = vmatprep.subr.mxu0 0.0
    %772 = vmatpush2.msra.mxu0 0.0
    %773 = vmatprep.subr.mxu0 0.0
    %774 = vmatpush2.msra.mxu0 0.0
    %775 = vmatprep.subr.mxu0 0.0
    %776 = vmatpush2.msra.mxu0 0.0
    %777 = vmatprep.mubr.f32.mxu0 0.0
    %778 = vmatmul.mubr.f32.gmra.mxu0 %v561
    %v779 = vpop.f32.mrf.mxu0
    %v780 = vadd.f32 0.0, %v779
    %v781 = vpop.f32.mrf.mxu0
    %782 = vmatprep.mubr.f32.mxu0 0.0
    %783 = vmatmul.mubr.f32.gmra.mxu0 %v561
    %v784 = vpop.f32.mrf.mxu0
    %v785 = vadd.f32 0.0, %v784
    %v786 = vpop.f32.mrf.mxu0
    %787 = vdwg.mxu0
    %v788 = vadd.f32 %v554, %v630
    %v789 = vadd.f32 %v555, %v635
    %v790 = vadd.f32 %v556, %v705
    %v791 = vadd.f32 %v557, %v710
    %v792 = vadd.f32 %v558, %v780
    %v793 = vadd.f32 %v559, %v785
    %v794 = vxor.u32 %v788, 2147483648
    %v795 = vxor.u32 %v789, 2147483648
    %v796 = vxor.u32 %v790, 2147483648
    %v797 = vxor.u32 %v791, 2147483648
    %v798 = vxor.u32 %v792, 2147483648
    %v799 = vxor.u32 %v793, 2147483648
    %v800 = vmul.f32 %v794, 1.442695
    %v801 = vpow.pop %v800
    %v802 = vmul.f32 %v795, 1.442695
    %v803 = vpow.pop %v802
    %v804 = vmul.f32 %v796, 1.442695
    %v805 = vpow.pop %v804
    %v806 = vmul.f32 %v797, 1.442695
    %v807 = vpow.pop %v806
    %v808 = vmul.f32 %v798, 1.442695
    %v809 = vpow.pop %v808
    %v810 = vmul.f32 %v799, 1.442695
    %v811 = vpow.pop %v810
    %v812 = vadd.f32 %v801, 1.0
    %v813 = vadd.f32 %v803, 1.0
    %v814 = vadd.f32 %v805, 1.0
    %v815 = vadd.f32 %v807, 1.0
    %v816 = vadd.f32 %v809, 1.0
    %v817 = vadd.f32 %v811, 1.0
    %v818 = vrcp.pop %v812
    %v819 = vmul.f32 1.0, %v818
    %v820 = vrcp.pop %v813
    %v821 = vmul.f32 1.0, %v820
    %v822 = vrcp.pop %v814
    %v823 = vmul.f32 1.0, %v822
    %v824 = vrcp.pop %v815
    %v825 = vmul.f32 1.0, %v824
    %v826 = vrcp.pop %v816
    %v827 = vmul.f32 1.0, %v826
    %v828 = vrcp.pop %v817
    %v829 = vmul.f32 1.0, %v828
    %v830 = vtanh.pop %v788
    %v831 = vtanh.pop %v789
    %v832 = vtanh.pop %v790
    %v833 = vtanh.pop %v791
    %v834 = vtanh.pop %v792
    %v835 = vtanh.pop %v793
    %v836 = vmul.f32 %v819, 0.0
    %v837 = vmul.f32 %v821, 0.0
    %v838 = vmul.f32 %v823, 0.0
    %v839 = vmul.f32 %v825, 0.0
    %v840 = vmul.f32 %v827, 0.0
    %v841 = vmul.f32 %v829, 0.0
    %848 = vrot.lane.b32.xlu0 %v830, 32
    %v849 = vpop.permute.xlu0 %848
    %850 = vrot.lane.b32.xlu0 %v831, 32
    %v851 = vpop.permute.xlu0 %850
    %852 = vrot.lane.b32.xlu0 %v832, 32
    %v853 = vpop.permute.xlu0 %852
    %854 = vrot.lane.b32.xlu0 %v833, 32
    %v855 = vpop.permute.xlu0 %854
    %856 = vrot.lane.b32.xlu0 %v834, 32
    %v857 = vpop.permute.xlu0 %856
    %858 = vrot.lane.b32.xlu0 %v835, 32
    %v859 = vpop.permute.xlu0 %858
    %v866 = vmul.f32 %v819, %v849
    %v867 = vmul.f32 %v821, %v851
    %v868 = vmul.f32 %v823, %v853
    %v869 = vmul.f32 %v825, %v855
    %v870 = vmul.f32 %v827, %v857
    %v871 = vmul.f32 %v829, %v859
    %878 = vrot.lane.b32.xlu0 %v866, 32
    %v879 = vpop.permute.xlu0 %878
    %880 = vrot.lane.b32.xlu0 %v867, 32
    %v881 = vpop.permute.xlu0 %880
    %882 = vrot.lane.b32.xlu0 %v868, 32
    %v883 = vpop.permute.xlu0 %882
    %884 = vrot.lane.b32.xlu0 %v869, 32
    %v885 = vpop.permute.xlu0 %884
    %886 = vrot.lane.b32.xlu0 %v870, 32
    %v887 = vpop.permute.xlu0 %886
    %888 = vrot.lane.b32.xlu0 %v871, 32
    %v889 = vpop.permute.xlu0 %888
    %v896 = vadd.f32 %v836, %v879
    %v897 = vadd.f32 %v837, %v881
    %v898 = vadd.f32 %v838, %v883
    %v899 = vadd.f32 %v839, %v885
    %v900 = vadd.f32 %v840, %v887
    %v901 = vadd.f32 %v841, %v889
    %v902 = vtanh.pop %v896
    %v903 = vtanh.pop %v897
    %v904 = vtanh.pop %v898
    %v905 = vtanh.pop %v899
    %v906 = vtanh.pop %v900
    %v907 = vtanh.pop %v901
    %914 = vrot.lane.b32.xlu0 %v902, 32
    %v915 = vpop.permute.xlu0 %914
    %916 = vrot.lane.b32.xlu0 %v903, 32
    %v917 = vpop.permute.xlu0 %916
    %918 = vrot.lane.b32.xlu0 %v904, 32
    %v919 = vpop.permute.xlu0 %918
    %920 = vrot.lane.b32.xlu0 %v905, 32
    %v921 = vpop.permute.xlu0 %920
    %922 = vrot.lane.b32.xlu0 %v906, 32
    %v923 = vpop.permute.xlu0 %922
    %924 = vrot.lane.b32.xlu0 %v907, 32
    %v925 = vpop.permute.xlu0 %924
    %v932 = vmul.f32 %v819, %v915
    %v933 = vmul.f32 %v821, %v917
    %v934 = vmul.f32 %v823, %v919
    %v935 = vmul.f32 %v825, %v921
    %v936 = vmul.f32 %v827, %v923
    %v937 = vmul.f32 %v829, %v925
    %s938 = scalar_lea.vmem [#allocation2], 48
    %v939 = vld [vmem:[%s938] sm:$0xff]
    %v940 = vld [vmem:[%s938 + $0x8] sm:$0xff]
    %v941 = vld [vmem:[%s938 + $0x10] sm:$0xff]
    %v942 = vld [vmem:[%s938 + $0x18] sm:$0xff]
    %v943 = vld [vmem:[%s938 + $0x20] sm:$0xff]
    %v944 = vld [vmem:[%s938 + $0x28] sm:$0xff]
    %947 = vrot.lane.b32.xlu0 %v932, 64
    %v948 = vpop.permute.xlu0 %947
    %949 = vrot.lane.b32.xlu0 %v933, 64
    %v950 = vpop.permute.xlu0 %949
    %v951 = vsel %vm84, %v948, 0
    %v953 = vsel %vm84, %v950, 0
    %955 = vmatprep.subr.mxu0 0.0
    %956 = vmatpush1.msra.mxu0 0.0
    %957 = vmatprep.subr.mxu0 0.0
    %958 = vmatpush1.msra.mxu0 0.0
    %959 = vmatprep.subr.mxu0 0.0
    %960 = vmatpush1.msra.mxu0 0.0
    %961 = vmatprep.subr.mxu0 0.0
    %962 = vmatpush1.msra.mxu0 0.0
    %963 = vmatprep.subr.mxu0 0.0
    %964 = vmatpush1.msra.mxu0 0.0
    %965 = vmatprep.subr.mxu0 0.0
    %966 = vmatpush1.msra.mxu0 0.0
    %967 = vmatprep.subr.mxu0 0.0
    %968 = vmatpush1.msra.mxu0 0.0
    %969 = vmatprep.subr.mxu0 0.0
    %970 = vmatpush1.msra.mxu0 0.0
    %971 = vmatprep.subr.mxu0 0.0
    %972 = vmatpush1.msra.mxu0 0.0
    %973 = vmatprep.subr.mxu0 0.0
    %974 = vmatpush1.msra.mxu0 0.0
    %975 = vmatprep.subr.mxu0 0.0
    %976 = vmatpush1.msra.mxu0 0.0
    %977 = vmatprep.subr.mxu0 0.0
    %978 = vmatpush1.msra.mxu0 0.0
    %979 = vmatprep.subr.mxu0 0.0
    %980 = vmatpush1.msra.mxu0 %v545
    %981 = vmatprep.subr.mxu0 0.0
    %982 = vmatpush1.msra.mxu0 %v544
    %983 = vmatprep.subr.mxu0 0.0
    %984 = vmatpush1.msra.mxu0 %v543
    %985 = vmatprep.subr.mxu0 0.0
    %986 = vmatpush1.msra.mxu0 %v542
    %987 = vmatprep.subr.mxu0 0.0
    %988 = vmatpush2.msra.mxu0 0.0
    %989 = vmatprep.subr.mxu0 0.0
    %990 = vmatpush2.msra.mxu0 0.0
    %991 = vmatprep.subr.mxu0 0.0
    %992 = vmatpush2.msra.mxu0 0.0
    %993 = vmatprep.subr.mxu0 0.0
    %994 = vmatpush2.msra.mxu0 0.0
    %995 = vmatprep.subr.mxu0 0.0
    %996 = vmatpush2.msra.mxu0 0.0
    %997 = vmatprep.subr.mxu0 0.0
    %998 = vmatpush2.msra.mxu0 0.0
    %999 = vmatprep.subr.mxu0 0.0
    %1000 = vmatpush2.msra.mxu0 0.0
    %1001 = vmatprep.subr.mxu0 0.0
    %1002 = vmatpush2.msra.mxu0 0.0
    %1003 = vmatprep.subr.mxu0 0.0
    %1004 = vmatpush2.msra.mxu0 0.0
    %1005 = vmatprep.subr.mxu0 0.0
    %1006 = vmatpush2.msra.mxu0 0.0
    %1007 = vmatprep.subr.mxu0 0.0
    %1008 = vmatpush2.msra.mxu0 0.0
    %1009 = vmatprep.subr.mxu0 0.0
    %1010 = vmatpush2.msra.mxu0 0.0
    %1011 = vmatprep.subr.mxu0 0.0
    %1012 = vmatpush2.msra.mxu0 0.0
    %1013 = vmatprep.subr.mxu0 0.0
    %1014 = vmatpush2.msra.mxu0 0.0
    %1015 = vmatprep.subr.mxu0 0.0
    %1016 = vmatpush2.msra.mxu0 0.0
    %1017 = vmatprep.subr.mxu0 0.0
    %1018 = vmatpush2.msra.mxu0 0.0
    %1019 = vmatprep.mubr.f32.mxu0 0.0
    %1020 = vmatmul.mubr.f32.gmra.mxu0 %v951
    %v1021 = vpop.f32.mrf.mxu0
    %v1022 = vadd.f32 0.0, %v1021
    %v1023 = vpop.f32.mrf.mxu0
    %1024 = vmatprep.mubr.f32.mxu0 0.0
    %1025 = vmatmul.mubr.f32.gmra.mxu0 %v953
    %v1026 = vpop.f32.mrf.mxu0
    %v1027 = vadd.f32 0.0, %v1026
    %v1028 = vpop.f32.mrf.mxu0
    %1029 = vdwg.mxu0
    %1032 = vrot.lane.b32.xlu0 %v934, 64
    %v1033 = vpop.permute.xlu0 %1032
    %1034 = vrot.lane.b32.xlu0 %v935, 64
    %v1035 = vpop.permute.xlu0 %1034
    %v1036 = vsel %vm84, %v1033, 0
    %v1038 = vsel %vm84, %v1035, 0
    %1040 = vmatprep.subr.mxu0 0.0
    %1041 = vmatpush1.msra.mxu0 0.0
    %1042 = vmatprep.subr.mxu0 0.0
    %1043 = vmatpush1.msra.mxu0 0.0
    %1044 = vmatprep.subr.mxu0 0.0
    %1045 = vmatpush1.msra.mxu0 0.0
    %1046 = vmatprep.subr.mxu0 0.0
    %1047 = vmatpush1.msra.mxu0 0.0
    %1048 = vmatprep.subr.mxu0 0.0
    %1049 = vmatpush1.msra.mxu0 0.0
    %1050 = vmatprep.subr.mxu0 0.0
    %1051 = vmatpush1.msra.mxu0 0.0
    %1052 = vmatprep.subr.mxu0 0.0
    %1053 = vmatpush1.msra.mxu0 0.0
    %1054 = vmatprep.subr.mxu0 0.0
    %1055 = vmatpush1.msra.mxu0 0.0
    %1056 = vmatprep.subr.mxu0 0.0
    %1057 = vmatpush1.msra.mxu0 0.0
    %1058 = vmatprep.subr.mxu0 0.0
    %1059 = vmatpush1.msra.mxu0 0.0
    %1060 = vmatprep.subr.mxu0 0.0
    %1061 = vmatpush1.msra.mxu0 0.0
    %1062 = vmatprep.subr.mxu0 0.0
    %1063 = vmatpush1.msra.mxu0 0.0
    %1064 = vmatprep.subr.mxu0 0.0
    %1065 = vmatpush1.msra.mxu0 %v549
    %1066 = vmatprep.subr.mxu0 0.0
    %1067 = vmatpush1.msra.mxu0 %v548
    %1068 = vmatprep.subr.mxu0 0.0
    %1069 = vmatpush1.msra.mxu0 %v547
    %1070 = vmatprep.subr.mxu0 0.0
    %1071 = vmatpush1.msra.mxu0 %v546
    %1072 = vmatprep.subr.mxu0 0.0
    %1073 = vmatpush2.msra.mxu0 0.0
    %1074 = vmatprep.subr.mxu0 0.0
    %1075 = vmatpush2.msra.mxu0 0.0
    %1076 = vmatprep.subr.mxu0 0.0
    %1077 = vmatpush2.msra.mxu0 0.0
    %1078 = vmatprep.subr.mxu0 0.0
    %1079 = vmatpush2.msra.mxu0 0.0
    %1080 = vmatprep.subr.mxu0 0.0
    %1081 = vmatpush2.msra.mxu0 0.0
    %1082 = vmatprep.subr.mxu0 0.0
    %1083 = vmatpush2.msra.mxu0 0.0
    %1084 = vmatprep.subr.mxu0 0.0
    %1085 = vmatpush2.msra.mxu0 0.0
    %1086 = vmatprep.subr.mxu0 0.0
    %1087 = vmatpush2.msra.mxu0 0.0
    %1088 = vmatprep.subr.mxu0 0.0
    %1089 = vmatpush2.msra.mxu0 0.0
    %1090 = vmatprep.subr.mxu0 0.0
    %1091 = vmatpush2.msra.mxu0 0.0
    %1092 = vmatprep.subr.mxu0 0.0
    %1093 = vmatpush2.msra.mxu0 0.0
    %1094 = vmatprep.subr.mxu0 0.0
    %1095 = vmatpush2.msra.mxu0 0.0
    %1096 = vmatprep.subr.mxu0 0.0
    %1097 = vmatpush2.msra.mxu0 0.0
    %1098 = vmatprep.subr.mxu0 0.0
    %1099 = vmatpush2.msra.mxu0 0.0
    %1100 = vmatprep.subr.mxu0 0.0
    %1101 = vmatpush2.msra.mxu0 0.0
    %1102 = vmatprep.subr.mxu0 0.0
    %1103 = vmatpush2.msra.mxu0 0.0
    %1104 = vmatprep.mubr.f32.mxu0 0.0
    %1105 = vmatmul.mubr.f32.gmra.mxu0 %v1036
    %v1106 = vpop.f32.mrf.mxu0
    %v1107 = vadd.f32 0.0, %v1106
    %v1108 = vpop.f32.mrf.mxu0
    %1109 = vmatprep.mubr.f32.mxu0 0.0
    %1110 = vmatmul.mubr.f32.gmra.mxu0 %v1038
    %v1111 = vpop.f32.mrf.mxu0
    %v1112 = vadd.f32 0.0, %v1111
    %v1113 = vpop.f32.mrf.mxu0
    %1114 = vdwg.mxu0
    %1117 = vrot.lane.b32.xlu0 %v936, 64
    %v1118 = vpop.permute.xlu0 %1117
    %1119 = vrot.lane.b32.xlu0 %v937, 64
    %v1120 = vpop.permute.xlu0 %1119
    %v1121 = vsel %vm84, %v1118, 0
    %v1123 = vsel %vm84, %v1120, 0
    %1125 = vmatprep.subr.mxu0 0.0
    %1126 = vmatpush1.msra.mxu0 0.0
    %1127 = vmatprep.subr.mxu0 0.0
    %1128 = vmatpush1.msra.mxu0 0.0
    %1129 = vmatprep.subr.mxu0 0.0
    %1130 = vmatpush1.msra.mxu0 0.0
    %1131 = vmatprep.subr.mxu0 0.0
    %1132 = vmatpush1.msra.mxu0 0.0
    %1133 = vmatprep.subr.mxu0 0.0
    %1134 = vmatpush1.msra.mxu0 0.0
    %1135 = vmatprep.subr.mxu0 0.0
    %1136 = vmatpush1.msra.mxu0 0.0
    %1137 = vmatprep.subr.mxu0 0.0
    %1138 = vmatpush1.msra.mxu0 0.0
    %1139 = vmatprep.subr.mxu0 0.0
    %1140 = vmatpush1.msra.mxu0 0.0
    %1141 = vmatprep.subr.mxu0 0.0
    %1142 = vmatpush1.msra.mxu0 0.0
    %1143 = vmatprep.subr.mxu0 0.0
    %1144 = vmatpush1.msra.mxu0 0.0
    %1145 = vmatprep.subr.mxu0 0.0
    %1146 = vmatpush1.msra.mxu0 0.0
    %1147 = vmatprep.subr.mxu0 0.0
    %1148 = vmatpush1.msra.mxu0 0.0
    %1149 = vmatprep.subr.mxu0 0.0
    %1150 = vmatpush1.msra.mxu0 %v553
    %1151 = vmatprep.subr.mxu0 0.0
    %1152 = vmatpush1.msra.mxu0 %v552
    %1153 = vmatprep.subr.mxu0 0.0
    %1154 = vmatpush1.msra.mxu0 %v551
    %1155 = vmatprep.subr.mxu0 0.0
    %1156 = vmatpush1.msra.mxu0 %v550
    %1157 = vmatprep.subr.mxu0 0.0
    %1158 = vmatpush2.msra.mxu0 0.0
    %1159 = vmatprep.subr.mxu0 0.0
    %1160 = vmatpush2.msra.mxu0 0.0
    %1161 = vmatprep.subr.mxu0 0.0
    %1162 = vmatpush2.msra.mxu0 0.0
    %1163 = vmatprep.subr.mxu0 0.0
    %1164 = vmatpush2.msra.mxu0 0.0
    %1165 = vmatprep.subr.mxu0 0.0
    %1166 = vmatpush2.msra.mxu0 0.0
    %1167 = vmatprep.subr.mxu0 0.0
    %1168 = vmatpush2.msra.mxu0 0.0
    %1169 = vmatprep.subr.mxu0 0.0
    %1170 = vmatpush2.msra.mxu0 0.0
    %1171 = vmatprep.subr.mxu0 0.0
    %1172 = vmatpush2.msra.mxu0 0.0
    %1173 = vmatprep.subr.mxu0 0.0
    %1174 = vmatpush2.msra.mxu0 0.0
    %1175 = vmatprep.subr.mxu0 0.0
    %1176 = vmatpush2.msra.mxu0 0.0
    %1177 = vmatprep.subr.mxu0 0.0
    %1178 = vmatpush2.msra.mxu0 0.0
    %1179 = vmatprep.subr.mxu0 0.0
    %1180 = vmatpush2.msra.mxu0 0.0
    %1181 = vmatprep.subr.mxu0 0.0
    %1182 = vmatpush2.msra.mxu0 0.0
    %1183 = vmatprep.subr.mxu0 0.0
    %1184 = vmatpush2.msra.mxu0 0.0
    %1185 = vmatprep.subr.mxu0 0.0
    %1186 = vmatpush2.msra.mxu0 0.0
    %1187 = vmatprep.subr.mxu0 0.0
    %1188 = vmatpush2.msra.mxu0 0.0
    %1189 = vmatprep.mubr.f32.mxu0 0.0
    %1190 = vmatmul.mubr.f32.gmra.mxu0 %v1121
    %v1191 = vpop.f32.mrf.mxu0
    %v1192 = vadd.f32 0.0, %v1191
    %v1193 = vpop.f32.mrf.mxu0
    %1194 = vmatprep.mubr.f32.mxu0 0.0
    %1195 = vmatmul.mubr.f32.gmra.mxu0 %v1123
    %v1196 = vpop.f32.mrf.mxu0
    %v1197 = vadd.f32 0.0, %v1196
    %v1198 = vpop.f32.mrf.mxu0
    %1199 = vdwg.mxu0
    %v1200 = vadd.f32 %v939, %v1022
    %v1201 = vadd.f32 %v940, %v1027
    %v1202 = vadd.f32 %v941, %v1107
    %v1203 = vadd.f32 %v942, %v1112
    %v1204 = vadd.f32 %v943, %v1192
    %v1205 = vadd.f32 %v944, %v1197
    %v1206 = vxor.u32 %v1200, 2147483648
    %v1207 = vxor.u32 %v1201, 2147483648
    %v1208 = vxor.u32 %v1202, 2147483648
    %v1209 = vxor.u32 %v1203, 2147483648
    %v1210 = vxor.u32 %v1204, 2147483648
    %v1211 = vxor.u32 %v1205, 2147483648
    %v1212 = vmul.f32 %v1206, 1.442695
    %v1213 = vpow.pop %v1212
    %v1214 = vmul.f32 %v1207, 1.442695
    %v1215 = vpow.pop %v1214
    %v1216 = vmul.f32 %v1208, 1.442695
    %v1217 = vpow.pop %v1216
    %v1218 = vmul.f32 %v1209, 1.442695
    %v1219 = vpow.pop %v1218
    %v1220 = vmul.f32 %v1210, 1.442695
    %v1221 = vpow.pop %v1220
    %v1222 = vmul.f32 %v1211, 1.442695
    %v1223 = vpow.pop %v1222
    %v1224 = vadd.f32 %v1213, 1.0
    %v1225 = vadd.f32 %v1215, 1.0
    %v1226 = vadd.f32 %v1217, 1.0
    %v1227 = vadd.f32 %v1219, 1.0
    %v1228 = vadd.f32 %v1221, 1.0
    %v1229 = vadd.f32 %v1223, 1.0
    %v1230 = vrcp.pop %v1224
    %v1231 = vmul.f32 1.0, %v1230
    %v1232 = vrcp.pop %v1225
    %v1233 = vmul.f32 1.0, %v1232
    %v1234 = vrcp.pop %v1226
    %v1235 = vmul.f32 1.0, %v1234
    %v1236 = vrcp.pop %v1227
    %v1237 = vmul.f32 1.0, %v1236
    %v1238 = vrcp.pop %v1228
    %v1239 = vmul.f32 1.0, %v1238
    %v1240 = vrcp.pop %v1229
    %v1241 = vmul.f32 1.0, %v1240
    %v1242 = vtanh.pop %v1200
    %v1243 = vtanh.pop %v1201
    %v1244 = vtanh.pop %v1202
    %v1245 = vtanh.pop %v1203
    %v1246 = vtanh.pop %v1204
    %v1247 = vtanh.pop %v1205
    %v1248 = vmul.f32 %v1231, %v896
    %v1249 = vmul.f32 %v1233, %v897
    %v1250 = vmul.f32 %v1235, %v898
    %v1251 = vmul.f32 %v1237, %v899
    %v1252 = vmul.f32 %v1239, %v900
    %v1253 = vmul.f32 %v1241, %v901
    %1260 = vrot.lane.b32.xlu0 %v1242, 32
    %v1261 = vpop.permute.xlu0 %1260
    %1262 = vrot.lane.b32.xlu0 %v1243, 32
    %v1263 = vpop.permute.xlu0 %1262
    %1264 = vrot.lane.b32.xlu0 %v1244, 32
    %v1265 = vpop.permute.xlu0 %1264
    %1266 = vrot.lane.b32.xlu0 %v1245, 32
    %v1267 = vpop.permute.xlu0 %1266
    %1268 = vrot.lane.b32.xlu0 %v1246, 32
    %v1269 = vpop.permute.xlu0 %1268
    %1270 = vrot.lane.b32.xlu0 %v1247, 32
    %v1271 = vpop.permute.xlu0 %1270
    %v1278 = vmul.f32 %v1231, %v1261
    %v1279 = vmul.f32 %v1233, %v1263
    %v1280 = vmul.f32 %v1235, %v1265
    %v1281 = vmul.f32 %v1237, %v1267
    %v1282 = vmul.f32 %v1239, %v1269
    %v1283 = vmul.f32 %v1241, %v1271
    %1290 = vrot.lane.b32.xlu0 %v1278, 32
    %v1291 = vpop.permute.xlu0 %1290
    %1292 = vrot.lane.b32.xlu0 %v1279, 32
    %v1293 = vpop.permute.xlu0 %1292
    %1294 = vrot.lane.b32.xlu0 %v1280, 32
    %v1295 = vpop.permute.xlu0 %1294
    %1296 = vrot.lane.b32.xlu0 %v1281, 32
    %v1297 = vpop.permute.xlu0 %1296
    %1298 = vrot.lane.b32.xlu0 %v1282, 32
    %v1299 = vpop.permute.xlu0 %1298
    %1300 = vrot.lane.b32.xlu0 %v1283, 32
    %v1301 = vpop.permute.xlu0 %1300
    %v1308 = vadd.f32 %v1248, %v1291
    %v1309 = vadd.f32 %v1249, %v1293
    %v1310 = vadd.f32 %v1250, %v1295
    %v1311 = vadd.f32 %v1251, %v1297
    %v1312 = vadd.f32 %v1252, %v1299
    %v1313 = vadd.f32 %v1253, %v1301
    %v1314 = vtanh.pop %v1308
    %v1315 = vtanh.pop %v1309
    %v1316 = vtanh.pop %v1310
    %v1317 = vtanh.pop %v1311
    %v1318 = vtanh.pop %v1312
    %v1319 = vtanh.pop %v1313
    %1326 = vrot.lane.b32.xlu0 %v1314, 32
    %v1327 = vpop.permute.xlu0 %1326
    %1328 = vrot.lane.b32.xlu0 %v1315, 32
    %v1329 = vpop.permute.xlu0 %1328
    %1330 = vrot.lane.b32.xlu0 %v1316, 32
    %v1331 = vpop.permute.xlu0 %1330
    %1332 = vrot.lane.b32.xlu0 %v1317, 32
    %v1333 = vpop.permute.xlu0 %1332
    %1334 = vrot.lane.b32.xlu0 %v1318, 32
    %v1335 = vpop.permute.xlu0 %1334
    %1336 = vrot.lane.b32.xlu0 %v1319, 32
    %v1337 = vpop.permute.xlu0 %1336
    %v1344 = vmul.f32 %v1231, %v1327
    %v1345 = vmul.f32 %v1233, %v1329
    %v1346 = vmul.f32 %v1235, %v1331
    %v1347 = vmul.f32 %v1237, %v1333
    %v1348 = vmul.f32 %v1239, %v1335
    %v1349 = vmul.f32 %v1241, %v1337
    %s1350 = scalar_lea.vmem [#allocation2], 96
    %v1351 = vld [vmem:[%s1350] sm:$0xff]
    %v1352 = vld [vmem:[%s1350 + $0x8] sm:$0xff]
    %v1353 = vld [vmem:[%s1350 + $0x10] sm:$0xff]
    %v1354 = vld [vmem:[%s1350 + $0x18] sm:$0xff]
    %v1355 = vld [vmem:[%s1350 + $0x20] sm:$0xff]
    %v1356 = vld [vmem:[%s1350 + $0x28] sm:$0xff]
    %1359 = vrot.lane.b32.xlu0 %v1344, 64
    %v1360 = vpop.permute.xlu0 %1359
    %1361 = vrot.lane.b32.xlu0 %v1345, 64
    %v1362 = vpop.permute.xlu0 %1361
    %v1363 = vsel %vm84, %v1360, 0
    %v1365 = vsel %vm84, %v1362, 0
    %1367 = vmatprep.subr.mxu0 0.0
    %1368 = vmatpush1.msra.mxu0 0.0
    %1369 = vmatprep.subr.mxu0 0.0
    %1370 = vmatpush1.msra.mxu0 0.0
    %1371 = vmatprep.subr.mxu0 0.0
    %1372 = vmatpush1.msra.mxu0 0.0
    %1373 = vmatprep.subr.mxu0 0.0
    %1374 = vmatpush1.msra.mxu0 0.0
    %1375 = vmatprep.subr.mxu0 0.0
    %1376 = vmatpush1.msra.mxu0 0.0
    %1377 = vmatprep.subr.mxu0 0.0
    %1378 = vmatpush1.msra.mxu0 0.0
    %1379 = vmatprep.subr.mxu0 0.0
    %1380 = vmatpush1.msra.mxu0 0.0
    %1381 = vmatprep.subr.mxu0 0.0
    %1382 = vmatpush1.msra.mxu0 0.0
    %1383 = vmatprep.subr.mxu0 0.0
    %1384 = vmatpush1.msra.mxu0 0.0
    %1385 = vmatprep.subr.mxu0 0.0
    %1386 = vmatpush1.msra.mxu0 0.0
    %1387 = vmatprep.subr.mxu0 0.0
    %1388 = vmatpush1.msra.mxu0 0.0
    %1389 = vmatprep.subr.mxu0 0.0
    %1390 = vmatpush1.msra.mxu0 0.0
    %1391 = vmatprep.subr.mxu0 0.0
    %1392 = vmatpush1.msra.mxu0 %v545
    %1393 = vmatprep.subr.mxu0 0.0
    %1394 = vmatpush1.msra.mxu0 %v544
    %1395 = vmatprep.subr.mxu0 0.0
    %1396 = vmatpush1.msra.mxu0 %v543
    %1397 = vmatprep.subr.mxu0 0.0
    %1398 = vmatpush1.msra.mxu0 %v542
    %1399 = vmatprep.subr.mxu0 0.0
    %1400 = vmatpush2.msra.mxu0 0.0
    %1401 = vmatprep.subr.mxu0 0.0
    %1402 = vmatpush2.msra.mxu0 0.0
    %1403 = vmatprep.subr.mxu0 0.0
    %1404 = vmatpush2.msra.mxu0 0.0
    %1405 = vmatprep.subr.mxu0 0.0
    %1406 = vmatpush2.msra.mxu0 0.0
    %1407 = vmatprep.subr.mxu0 0.0
    %1408 = vmatpush2.msra.mxu0 0.0
    %1409 = vmatprep.subr.mxu0 0.0
    %1410 = vmatpush2.msra.mxu0 0.0
    %1411 = vmatprep.subr.mxu0 0.0
    %1412 = vmatpush2.msra.mxu0 0.0
    %1413 = vmatprep.subr.mxu0 0.0
    %1414 = vmatpush2.msra.mxu0 0.0
    %1415 = vmatprep.subr.mxu0 0.0
    %1416 = vmatpush2.msra.mxu0 0.0
    %1417 = vmatprep.subr.mxu0 0.0
    %1418 = vmatpush2.msra.mxu0 0.0
    %1419 = vmatprep.subr.mxu0 0.0
    %1420 = vmatpush2.msra.mxu0 0.0
    %1421 = vmatprep.subr.mxu0 0.0
    %1422 = vmatpush2.msra.mxu0 0.0
    %1423 = vmatprep.subr.mxu0 0.0
    %1424 = vmatpush2.msra.mxu0 0.0
    %1425 = vmatprep.subr.mxu0 0.0
    %1426 = vmatpush2.msra.mxu0 0.0
    %1427 = vmatprep.subr.mxu0 0.0
    %1428 = vmatpush2.msra.mxu0 0.0
    %1429 = vmatprep.subr.mxu0 0.0
    %1430 = vmatpush2.msra.mxu0 0.0
    %1431 = vmatprep.mubr.f32.mxu0 0.0
    %1432 = vmatmul.mubr.f32.gmra.mxu0 %v1363
    %v1433 = vpop.f32.mrf.mxu0
    %v1434 = vadd.f32 0.0, %v1433
    %v1435 = vpop.f32.mrf.mxu0
    %1436 = vmatprep.mubr.f32.mxu0 0.0
    %1437 = vmatmul.mubr.f32.gmra.mxu0 %v1365
    %v1438 = vpop.f32.mrf.mxu0
    %v1439 = vadd.f32 0.0, %v1438
    %v1440 = vpop.f32.mrf.mxu0
    %1441 = vdwg.mxu0
    %1444 = vrot.lane.b32.xlu0 %v1346, 64
    %v1445 = vpop.permute.xlu0 %1444
    %1446 = vrot.lane.b32.xlu0 %v1347, 64
    %v1447 = vpop.permute.xlu0 %1446
    %v1448 = vsel %vm84, %v1445, 0
    %v1450 = vsel %vm84, %v1447, 0
    %1452 = vmatprep.subr.mxu0 0.0
    %1453 = vmatpush1.msra.mxu0 0.0
    %1454 = vmatprep.subr.mxu0 0.0
    %1455 = vmatpush1.msra.mxu0 0.0
    %1456 = vmatprep.subr.mxu0 0.0
    %1457 = vmatpush1.msra.mxu0 0.0
    %1458 = vmatprep.subr.mxu0 0.0
    %1459 = vmatpush1.msra.mxu0 0.0
    %1460 = vmatprep.subr.mxu0 0.0
    %1461 = vmatpush1.msra.mxu0 0.0
    %1462 = vmatprep.subr.mxu0 0.0
    %1463 = vmatpush1.msra.mxu0 0.0
    %1464 = vmatprep.subr.mxu0 0.0
    %1465 = vmatpush1.msra.mxu0 0.0
    %1466 = vmatprep.subr.mxu0 0.0
    %1467 = vmatpush1.msra.mxu0 0.0
    %1468 = vmatprep.subr.mxu0 0.0
    %1469 = vmatpush1.msra.mxu0 0.0
    %1470 = vmatprep.subr.mxu0 0.0
    %1471 = vmatpush1.msra.mxu0 0.0
    %1472 = vmatprep.subr.mxu0 0.0
    %1473 = vmatpush1.msra.mxu0 0.0
    %1474 = vmatprep.subr.mxu0 0.0
    %1475 = vmatpush1.msra.mxu0 0.0
    %1476 = vmatprep.subr.mxu0 0.0
    %1477 = vmatpush1.msra.mxu0 %v549
    %1478 = vmatprep.subr.mxu0 0.0
    %1479 = vmatpush1.msra.mxu0 %v548
    %1480 = vmatprep.subr.mxu0 0.0
    %1481 = vmatpush1.msra.mxu0 %v547
    %1482 = vmatprep.subr.mxu0 0.0
    %1483 = vmatpush1.msra.mxu0 %v546
    %1484 = vmatprep.subr.mxu0 0.0
    %1485 = vmatpush2.msra.mxu0 0.0
    %1486 = vmatprep.subr.mxu0 0.0
    %1487 = vmatpush2.msra.mxu0 0.0
    %1488 = vmatprep.subr.mxu0 0.0
    %1489 = vmatpush2.msra.mxu0 0.0
    %1490 = vmatprep.subr.mxu0 0.0
    %1491 = vmatpush2.msra.mxu0 0.0
    %1492 = vmatprep.subr.mxu0 0.0
    %1493 = vmatpush2.msra.mxu0 0.0
    %1494 = vmatprep.subr.mxu0 0.0
    %1495 = vmatpush2.msra.mxu0 0.0
    %1496 = vmatprep.subr.mxu0 0.0
    %1497 = vmatpush2.msra.mxu0 0.0
    %1498 = vmatprep.subr.mxu0 0.0
    %1499 = vmatpush2.msra.mxu0 0.0
    %1500 = vmatprep.subr.mxu0 0.0
    %1501 = vmatpush2.msra.mxu0 0.0
    %1502 = vmatprep.subr.mxu0 0.0
    %1503 = vmatpush2.msra.mxu0 0.0
    %1504 = vmatprep.subr.mxu0 0.0
    %1505 = vmatpush2.msra.mxu0 0.0
    %1506 = vmatprep.subr.mxu0 0.0
    %1507 = vmatpush2.msra.mxu0 0.0
    %1508 = vmatprep.subr.mxu0 0.0
    %1509 = vmatpush2.msra.mxu0 0.0
    %1510 = vmatprep.subr.mxu0 0.0
    %1511 = vmatpush2.msra.mxu0 0.0
    %1512 = vmatprep.subr.mxu0 0.0
    %1513 = vmatpush2.msra.mxu0 0.0
    %1514 = vmatprep.subr.mxu0 0.0
    %1515 = vmatpush2.msra.mxu0 0.0
    %1516 = vmatprep.mubr.f32.mxu0 0.0
    %1517 = vmatmul.mubr.f32.gmra.mxu0 %v1448
    %v1518 = vpop.f32.mrf.mxu0
    %v1519 = vadd.f32 0.0, %v1518
    %v1520 = vpop.f32.mrf.mxu0
    %1521 = vmatprep.mubr.f32.mxu0 0.0
    %1522 = vmatmul.mubr.f32.gmra.mxu0 %v1450
    %v1523 = vpop.f32.mrf.mxu0
    %v1524 = vadd.f32 0.0, %v1523
    %v1525 = vpop.f32.mrf.mxu0
    %1526 = vdwg.mxu0
    %1529 = vrot.lane.b32.xlu0 %v1348, 64
    %v1530 = vpop.permute.xlu0 %1529
    %1531 = vrot.lane.b32.xlu0 %v1349, 64
    %v1532 = vpop.permute.xlu0 %1531
    %v1533 = vsel %vm84, %v1530, 0
    %v1535 = vsel %vm84, %v1532, 0
    %1537 = vmatprep.subr.mxu0 0.0
    %1538 = vmatpush1.msra.mxu0 0.0
    %1539 = vmatprep.subr.mxu0 0.0
    %1540 = vmatpush1.msra.mxu0 0.0
    %1541 = vmatprep.subr.mxu0 0.0
    %1542 = vmatpush1.msra.mxu0 0.0
    %1543 = vmatprep.subr.mxu0 0.0
    %1544 = vmatpush1.msra.mxu0 0.0
    %1545 = vmatprep.subr.mxu0 0.0
    %1546 = vmatpush1.msra.mxu0 0.0
    %1547 = vmatprep.subr.mxu0 0.0
    %1548 = vmatpush1.msra.mxu0 0.0
    %1549 = vmatprep.subr.mxu0 0.0
    %1550 = vmatpush1.msra.mxu0 0.0
    %1551 = vmatprep.subr.mxu0 0.0
    %1552 = vmatpush1.msra.mxu0 0.0
    %1553 = vmatprep.subr.mxu0 0.0
    %1554 = vmatpush1.msra.mxu0 0.0
    %1555 = vmatprep.subr.mxu0 0.0
    %1556 = vmatpush1.msra.mxu0 0.0
    %1557 = vmatprep.subr.mxu0 0.0
    %1558 = vmatpush1.msra.mxu0 0.0
    %1559 = vmatprep.subr.mxu0 0.0
    %1560 = vmatpush1.msra.mxu0 0.0
    %1561 = vmatprep.subr.mxu0 0.0
    %1562 = vmatpush1.msra.mxu0 %v553
    %1563 = vmatprep.subr.mxu0 0.0
    %1564 = vmatpush1.msra.mxu0 %v552
    %1565 = vmatprep.subr.mxu0 0.0
    %1566 = vmatpush1.msra.mxu0 %v551
    %1567 = vmatprep.subr.mxu0 0.0
    %1568 = vmatpush1.msra.mxu0 %v550
    %1569 = vmatprep.subr.mxu0 0.0
    %1570 = vmatpush2.msra.mxu0 0.0
    %1571 = vmatprep.subr.mxu0 0.0
    %1572 = vmatpush2.msra.mxu0 0.0
    %1573 = vmatprep.subr.mxu0 0.0
    %1574 = vmatpush2.msra.mxu0 0.0
    %1575 = vmatprep.subr.mxu0 0.0
    %1576 = vmatpush2.msra.mxu0 0.0
    %1577 = vmatprep.subr.mxu0 0.0
    %1578 = vmatpush2.msra.mxu0 0.0
    %1579 = vmatprep.subr.mxu0 0.0
    %1580 = vmatpush2.msra.mxu0 0.0
    %1581 = vmatprep.subr.mxu0 0.0
    %1582 = vmatpush2.msra.mxu0 0.0
    %1583 = vmatprep.subr.mxu0 0.0
    %1584 = vmatpush2.msra.mxu0 0.0
    %1585 = vmatprep.subr.mxu0 0.0
    %1586 = vmatpush2.msra.mxu0 0.0
    %1587 = vmatprep.subr.mxu0 0.0
    %1588 = vmatpush2.msra.mxu0 0.0
    %1589 = vmatprep.subr.mxu0 0.0
    %1590 = vmatpush2.msra.mxu0 0.0
    %1591 = vmatprep.subr.mxu0 0.0
    %1592 = vmatpush2.msra.mxu0 0.0
    %1593 = vmatprep.subr.mxu0 0.0
    %1594 = vmatpush2.msra.mxu0 0.0
    %1595 = vmatprep.subr.mxu0 0.0
    %1596 = vmatpush2.msra.mxu0 0.0
    %1597 = vmatprep.subr.mxu0 0.0
    %1598 = vmatpush2.msra.mxu0 0.0
    %1599 = vmatprep.subr.mxu0 0.0
    %1600 = vmatpush2.msra.mxu0 0.0
    %1601 = vmatprep.mubr.f32.mxu0 0.0
    %1602 = vmatmul.mubr.f32.gmra.mxu0 %v1533
    %v1603 = vpop.f32.mrf.mxu0
    %v1604 = vadd.f32 0.0, %v1603
    %v1605 = vpop.f32.mrf.mxu0
    %1606 = vmatprep.mubr.f32.mxu0 0.0
    %1607 = vmatmul.mubr.f32.gmra.mxu0 %v1535
    %v1608 = vpop.f32.mrf.mxu0
    %v1609 = vadd.f32 0.0, %v1608
    %v1610 = vpop.f32.mrf.mxu0
    %1611 = vdwg.mxu0
    %v1612 = vadd.f32 %v1351, %v1434
    %v1613 = vadd.f32 %v1352, %v1439
    %v1614 = vadd.f32 %v1353, %v1519
    %v1615 = vadd.f32 %v1354, %v1524
    %v1616 = vadd.f32 %v1355, %v1604
    %v1617 = vadd.f32 %v1356, %v1609
    %v1618 = vxor.u32 %v1612, 2147483648
    %v1619 = vxor.u32 %v1613, 2147483648
    %v1620 = vxor.u32 %v1614, 2147483648
    %v1621 = vxor.u32 %v1615, 2147483648
    %v1622 = vxor.u32 %v1616, 2147483648
    %v1623 = vxor.u32 %v1617, 2147483648
    %v1624 = vmul.f32 %v1618, 1.442695
    %v1625 = vpow.pop %v1624
    %v1626 = vmul.f32 %v1619, 1.442695
    %v1627 = vpow.pop %v1626
    %v1628 = vmul.f32 %v1620, 1.442695
    %v1629 = vpow.pop %v1628
    %v1630 = vmul.f32 %v1621, 1.442695
    %v1631 = vpow.pop %v1630
    %v1632 = vmul.f32 %v1622, 1.442695
    %v1633 = vpow.pop %v1632
    %v1634 = vmul.f32 %v1623, 1.442695
    %v1635 = vpow.pop %v1634
    %v1636 = vadd.f32 %v1625, 1.0
    %v1637 = vadd.f32 %v1627, 1.0
    %v1638 = vadd.f32 %v1629, 1.0
    %v1639 = vadd.f32 %v1631, 1.0
    %v1640 = vadd.f32 %v1633, 1.0
    %v1641 = vadd.f32 %v1635, 1.0
    %v1642 = vrcp.pop %v1636
    %v1643 = vmul.f32 1.0, %v1642
    %v1644 = vrcp.pop %v1637
    %v1645 = vmul.f32 1.0, %v1644
    %v1646 = vrcp.pop %v1638
    %v1647 = vmul.f32 1.0, %v1646
    %v1648 = vrcp.pop %v1639
    %v1649 = vmul.f32 1.0, %v1648
    %v1650 = vrcp.pop %v1640
    %v1651 = vmul.f32 1.0, %v1650
    %v1652 = vrcp.pop %v1641
    %v1653 = vmul.f32 1.0, %v1652
    %v1654 = vtanh.pop %v1612
    %v1655 = vtanh.pop %v1613
    %v1656 = vtanh.pop %v1614
    %v1657 = vtanh.pop %v1615
    %v1658 = vtanh.pop %v1616
    %v1659 = vtanh.pop %v1617
    %v1660 = vmul.f32 %v1643, %v1308
    %v1661 = vmul.f32 %v1645, %v1309
    %v1662 = vmul.f32 %v1647, %v1310
    %v1663 = vmul.f32 %v1649, %v1311
    %v1664 = vmul.f32 %v1651, %v1312
    %v1665 = vmul.f32 %v1653, %v1313
    %1672 = vrot.lane.b32.xlu0 %v1654, 32
    %v1673 = vpop.permute.xlu0 %1672
    %1674 = vrot.lane.b32.xlu0 %v1655, 32
    %v1675 = vpop.permute.xlu0 %1674
    %1676 = vrot.lane.b32.xlu0 %v1656, 32
    %v1677 = vpop.permute.xlu0 %1676
    %1678 = vrot.lane.b32.xlu0 %v1657, 32
    %v1679 = vpop.permute.xlu0 %1678
    %1680 = vrot.lane.b32.xlu0 %v1658, 32
    %v1681 = vpop.permute.xlu0 %1680
    %1682 = vrot.lane.b32.xlu0 %v1659, 32
    %v1683 = vpop.permute.xlu0 %1682
    %v1690 = vmul.f32 %v1643, %v1673
    %v1691 = vmul.f32 %v1645, %v1675
    %v1692 = vmul.f32 %v1647, %v1677
    %v1693 = vmul.f32 %v1649, %v1679
    %v1694 = vmul.f32 %v1651, %v1681
    %v1695 = vmul.f32 %v1653, %v1683
    %1702 = vrot.lane.b32.xlu0 %v1690, 32
    %v1703 = vpop.permute.xlu0 %1702
    %1704 = vrot.lane.b32.xlu0 %v1691, 32
    %v1705 = vpop.permute.xlu0 %1704
    %1706 = vrot.lane.b32.xlu0 %v1692, 32
    %v1707 = vpop.permute.xlu0 %1706
    %1708 = vrot.lane.b32.xlu0 %v1693, 32
    %v1709 = vpop.permute.xlu0 %1708
    %1710 = vrot.lane.b32.xlu0 %v1694, 32
    %v1711 = vpop.permute.xlu0 %1710
    %1712 = vrot.lane.b32.xlu0 %v1695, 32
    %v1713 = vpop.permute.xlu0 %1712
    %v1720 = vadd.f32 %v1660, %v1703
    %v1721 = vadd.f32 %v1661, %v1705
    %v1722 = vadd.f32 %v1662, %v1707
    %v1723 = vadd.f32 %v1663, %v1709
    %v1724 = vadd.f32 %v1664, %v1711
    %v1725 = vadd.f32 %v1665, %v1713
    %v1726 = vtanh.pop %v1720
    %v1727 = vtanh.pop %v1721
    %v1728 = vtanh.pop %v1722
    %v1729 = vtanh.pop %v1723
    %v1730 = vtanh.pop %v1724
    %v1731 = vtanh.pop %v1725
    %1738 = vrot.lane.b32.xlu0 %v1726, 32
    %v1739 = vpop.permute.xlu0 %1738
    %1740 = vrot.lane.b32.xlu0 %v1727, 32
    %v1741 = vpop.permute.xlu0 %1740
    %1742 = vrot.lane.b32.xlu0 %v1728, 32
    %v1743 = vpop.permute.xlu0 %1742
    %1744 = vrot.lane.b32.xlu0 %v1729, 32
    %v1745 = vpop.permute.xlu0 %1744
    %1746 = vrot.lane.b32.xlu0 %v1730, 32
    %v1747 = vpop.permute.xlu0 %1746
    %1748 = vrot.lane.b32.xlu0 %v1731, 32
    %v1749 = vpop.permute.xlu0 %1748
    %v1756 = vmul.f32 %v1643, %v1739
    %v1757 = vmul.f32 %v1645, %v1741
    %v1758 = vmul.f32 %v1647, %v1743
    %v1759 = vmul.f32 %v1649, %v1745
    %v1760 = vmul.f32 %v1651, %v1747
    %v1761 = vmul.f32 %v1653, %v1749
    %s1762 = scalar_lea.vmem [#allocation2], 144
    %v1763 = vld [vmem:[%s1762] sm:$0xff]
    %v1764 = vld [vmem:[%s1762 + $0x8] sm:$0xff]
    %v1765 = vld [vmem:[%s1762 + $0x10] sm:$0xff]
    %v1766 = vld [vmem:[%s1762 + $0x18] sm:$0xff]
    %v1767 = vld [vmem:[%s1762 + $0x20] sm:$0xff]
    %v1768 = vld [vmem:[%s1762 + $0x28] sm:$0xff]
    %1771 = vrot.lane.b32.xlu0 %v1756, 64
    %v1772 = vpop.permute.xlu0 %1771
    %1773 = vrot.lane.b32.xlu0 %v1757, 64
    %v1774 = vpop.permute.xlu0 %1773
    %v1775 = vsel %vm84, %v1772, 0
    %v1777 = vsel %vm84, %v1774, 0
    %1779 = vmatprep.subr.mxu0 0.0
    %1780 = vmatpush1.msra.mxu0 0.0
    %1781 = vmatprep.subr.mxu0 0.0
    %1782 = vmatpush1.msra.mxu0 0.0
    %1783 = vmatprep.subr.mxu0 0.0
    %1784 = vmatpush1.msra.mxu0 0.0
    %1785 = vmatprep.subr.mxu0 0.0
    %1786 = vmatpush1.msra.mxu0 0.0
    %1787 = vmatprep.subr.mxu0 0.0
    %1788 = vmatpush1.msra.mxu0 0.0
    %1789 = vmatprep.subr.mxu0 0.0
    %1790 = vmatpush1.msra.mxu0 0.0
    %1791 = vmatprep.subr.mxu0 0.0
    %1792 = vmatpush1.msra.mxu0 0.0
    %1793 = vmatprep.subr.mxu0 0.0
    %1794 = vmatpush1.msra.mxu0 0.0
    %1795 = vmatprep.subr.mxu0 0.0
    %1796 = vmatpush1.msra.mxu0 0.0
    %1797 = vmatprep.subr.mxu0 0.0
    %1798 = vmatpush1.msra.mxu0 0.0
    %1799 = vmatprep.subr.mxu0 0.0
    %1800 = vmatpush1.msra.mxu0 0.0
    %1801 = vmatprep.subr.mxu0 0.0
    %1802 = vmatpush1.msra.mxu0 0.0
    %1803 = vmatprep.subr.mxu0 0.0
    %1804 = vmatpush1.msra.mxu0 %v545
    %1805 = vmatprep.subr.mxu0 0.0
    %1806 = vmatpush1.msra.mxu0 %v544
    %1807 = vmatprep.subr.mxu0 0.0
    %1808 = vmatpush1.msra.mxu0 %v543
    %1809 = vmatprep.subr.mxu0 0.0
    %1810 = vmatpush1.msra.mxu0 %v542
    %1811 = vmatprep.subr.mxu0 0.0
    %1812 = vmatpush2.msra.mxu0 0.0
    %1813 = vmatprep.subr.mxu0 0.0
    %1814 = vmatpush2.msra.mxu0 0.0
    %1815 = vmatprep.subr.mxu0 0.0
    %1816 = vmatpush2.msra.mxu0 0.0
    %1817 = vmatprep.subr.mxu0 0.0
    %1818 = vmatpush2.msra.mxu0 0.0
    %1819 = vmatprep.subr.mxu0 0.0
    %1820 = vmatpush2.msra.mxu0 0.0
    %1821 = vmatprep.subr.mxu0 0.0
    %1822 = vmatpush2.msra.mxu0 0.0
    %1823 = vmatprep.subr.mxu0 0.0
    %1824 = vmatpush2.msra.mxu0 0.0
    %1825 = vmatprep.subr.mxu0 0.0
    %1826 = vmatpush2.msra.mxu0 0.0
    %1827 = vmatprep.subr.mxu0 0.0
    %1828 = vmatpush2.msra.mxu0 0.0
    %1829 = vmatprep.subr.mxu0 0.0
    %1830 = vmatpush2.msra.mxu0 0.0
    %1831 = vmatprep.subr.mxu0 0.0
    %1832 = vmatpush2.msra.mxu0 0.0
    %1833 = vmatprep.subr.mxu0 0.0
    %1834 = vmatpush2.msra.mxu0 0.0
    %1835 = vmatprep.subr.mxu0 0.0
    %1836 = vmatpush2.msra.mxu0 0.0
    %1837 = vmatprep.subr.mxu0 0.0
    %1838 = vmatpush2.msra.mxu0 0.0
    %1839 = vmatprep.subr.mxu0 0.0
    %1840 = vmatpush2.msra.mxu0 0.0
    %1841 = vmatprep.subr.mxu0 0.0
    %1842 = vmatpush2.msra.mxu0 0.0
    %1843 = vmatprep.mubr.f32.mxu0 0.0
    %1844 = vmatmul.mubr.f32.gmra.mxu0 %v1775
    %v1845 = vpop.f32.mrf.mxu0
    %v1846 = vadd.f32 0.0, %v1845
    %v1847 = vpop.f32.mrf.mxu0
    %1848 = vmatprep.mubr.f32.mxu0 0.0
    %1849 = vmatmul.mubr.f32.gmra.mxu0 %v1777
    %v1850 = vpop.f32.mrf.mxu0
    %v1851 = vadd.f32 0.0, %v1850
    %v1852 = vpop.f32.mrf.mxu0
    %1853 = vdwg.mxu0
    %1856 = vrot.lane.b32.xlu0 %v1758, 64
    %v1857 = vpop.permute.xlu0 %1856
    %1858 = vrot.lane.b32.xlu0 %v1759, 64
    %v1859 = vpop.permute.xlu0 %1858
    %v1860 = vsel %vm84, %v1857, 0
    %v1862 = vsel %vm84, %v1859, 0
    %1864 = vmatprep.subr.mxu0 0.0
    %1865 = vmatpush1.msra.mxu0 0.0
    %1866 = vmatprep.subr.mxu0 0.0
    %1867 = vmatpush1.msra.mxu0 0.0
    %1868 = vmatprep.subr.mxu0 0.0
    %1869 = vmatpush1.msra.mxu0 0.0
    %1870 = vmatprep.subr.mxu0 0.0
    %1871 = vmatpush1.msra.mxu0 0.0
    %1872 = vmatprep.subr.mxu0 0.0
    %1873 = vmatpush1.msra.mxu0 0.0
    %1874 = vmatprep.subr.mxu0 0.0
    %1875 = vmatpush1.msra.mxu0 0.0
    %1876 = vmatprep.subr.mxu0 0.0
    %1877 = vmatpush1.msra.mxu0 0.0
    %1878 = vmatprep.subr.mxu0 0.0
    %1879 = vmatpush1.msra.mxu0 0.0
    %1880 = vmatprep.subr.mxu0 0.0
    %1881 = vmatpush1.msra.mxu0 0.0
    %1882 = vmatprep.subr.mxu0 0.0
    %1883 = vmatpush1.msra.mxu0 0.0
    %1884 = vmatprep.subr.mxu0 0.0
    %1885 = vmatpush1.msra.mxu0 0.0
    %1886 = vmatprep.subr.mxu0 0.0
    %1887 = vmatpush1.msra.mxu0 0.0
    %1888 = vmatprep.subr.mxu0 0.0
    %1889 = vmatpush1.msra.mxu0 %v549
    %1890 = vmatprep.subr.mxu0 0.0
    %1891 = vmatpush1.msra.mxu0 %v548
    %1892 = vmatprep.subr.mxu0 0.0
    %1893 = vmatpush1.msra.mxu0 %v547
    %1894 = vmatprep.subr.mxu0 0.0
    %1895 = vmatpush1.msra.mxu0 %v546
    %1896 = vmatprep.subr.mxu0 0.0
    %1897 = vmatpush2.msra.mxu0 0.0
    %1898 = vmatprep.subr.mxu0 0.0
    %1899 = vmatpush2.msra.mxu0 0.0
    %1900 = vmatprep.subr.mxu0 0.0
    %1901 = vmatpush2.msra.mxu0 0.0
    %1902 = vmatprep.subr.mxu0 0.0
    %1903 = vmatpush2.msra.mxu0 0.0
    %1904 = vmatprep.subr.mxu0 0.0
    %1905 = vmatpush2.msra.mxu0 0.0
    %1906 = vmatprep.subr.mxu0 0.0
    %1907 = vmatpush2.msra.mxu0 0.0
    %1908 = vmatprep.subr.mxu0 0.0
    %1909 = vmatpush2.msra.mxu0 0.0
    %1910 = vmatprep.subr.mxu0 0.0
    %1911 = vmatpush2.msra.mxu0 0.0
    %1912 = vmatprep.subr.mxu0 0.0
    %1913 = vmatpush2.msra.mxu0 0.0
    %1914 = vmatprep.subr.mxu0 0.0
    %1915 = vmatpush2.msra.mxu0 0.0
    %1916 = vmatprep.subr.mxu0 0.0
    %1917 = vmatpush2.msra.mxu0 0.0
    %1918 = vmatprep.subr.mxu0 0.0
    %1919 = vmatpush2.msra.mxu0 0.0
    %1920 = vmatprep.subr.mxu0 0.0
    %1921 = vmatpush2.msra.mxu0 0.0
    %1922 = vmatprep.subr.mxu0 0.0
    %1923 = vmatpush2.msra.mxu0 0.0
    %1924 = vmatprep.subr.mxu0 0.0
    %1925 = vmatpush2.msra.mxu0 0.0
    %1926 = vmatprep.subr.mxu0 0.0
    %1927 = vmatpush2.msra.mxu0 0.0
    %1928 = vmatprep.mubr.f32.mxu0 0.0
    %1929 = vmatmul.mubr.f32.gmra.mxu0 %v1860
    %v1930 = vpop.f32.mrf.mxu0
    %v1931 = vadd.f32 0.0, %v1930
    %v1932 = vpop.f32.mrf.mxu0
    %1933 = vmatprep.mubr.f32.mxu0 0.0
    %1934 = vmatmul.mubr.f32.gmra.mxu0 %v1862
    %v1935 = vpop.f32.mrf.mxu0
    %v1936 = vadd.f32 0.0, %v1935
    %v1937 = vpop.f32.mrf.mxu0
    %1938 = vdwg.mxu0
    %1941 = vrot.lane.b32.xlu0 %v1760, 64
    %v1942 = vpop.permute.xlu0 %1941
    %1943 = vrot.lane.b32.xlu0 %v1761, 64
    %v1944 = vpop.permute.xlu0 %1943
    %v1945 = vsel %vm84, %v1942, 0
    %v1947 = vsel %vm84, %v1944, 0
    %1949 = vmatprep.subr.mxu0 0.0
    %1950 = vmatpush1.msra.mxu0 0.0
    %1951 = vmatprep.subr.mxu0 0.0
    %1952 = vmatpush1.msra.mxu0 0.0
    %1953 = vmatprep.subr.mxu0 0.0
    %1954 = vmatpush1.msra.mxu0 0.0
    %1955 = vmatprep.subr.mxu0 0.0
    %1956 = vmatpush1.msra.mxu0 0.0
    %1957 = vmatprep.subr.mxu0 0.0
    %1958 = vmatpush1.msra.mxu0 0.0
    %1959 = vmatprep.subr.mxu0 0.0
    %1960 = vmatpush1.msra.mxu0 0.0
    %1961 = vmatprep.subr.mxu0 0.0
    %1962 = vmatpush1.msra.mxu0 0.0
    %1963 = vmatprep.subr.mxu0 0.0
    %1964 = vmatpush1.msra.mxu0 0.0
    %1965 = vmatprep.subr.mxu0 0.0
    %1966 = vmatpush1.msra.mxu0 0.0
    %1967 = vmatprep.subr.mxu0 0.0
    %1968 = vmatpush1.msra.mxu0 0.0
    %1969 = vmatprep.subr.mxu0 0.0
    %1970 = vmatpush1.msra.mxu0 0.0
    %1971 = vmatprep.subr.mxu0 0.0
    %1972 = vmatpush1.msra.mxu0 0.0
    %1973 = vmatprep.subr.mxu0 0.0
    %1974 = vmatpush1.msra.mxu0 %v553
    %1975 = vmatprep.subr.mxu0 0.0
    %1976 = vmatpush1.msra.mxu0 %v552
    %1977 = vmatprep.subr.mxu0 0.0
    %1978 = vmatpush1.msra.mxu0 %v551
    %1979 = vmatprep.subr.mxu0 0.0
    %1980 = vmatpush1.msra.mxu0 %v550
    %1981 = vmatprep.subr.mxu0 0.0
    %1982 = vmatpush2.msra.mxu0 0.0
    %1983 = vmatprep.subr.mxu0 0.0
    %1984 = vmatpush2.msra.mxu0 0.0
    %1985 = vmatprep.subr.mxu0 0.0
    %1986 = vmatpush2.msra.mxu0 0.0
    %1987 = vmatprep.subr.mxu0 0.0
    %1988 = vmatpush2.msra.mxu0 0.0
    %1989 = vmatprep.subr.mxu0 0.0
    %1990 = vmatpush2.msra.mxu0 0.0
    %1991 = vmatprep.subr.mxu0 0.0
    %1992 = vmatpush2.msra.mxu0 0.0
    %1993 = vmatprep.subr.mxu0 0.0
    %1994 = vmatpush2.msra.mxu0 0.0
    %1995 = vmatprep.subr.mxu0 0.0
    %1996 = vmatpush2.msra.mxu0 0.0
    %1997 = vmatprep.subr.mxu0 0.0
    %1998 = vmatpush2.msra.mxu0 0.0
    %1999 = vmatprep.subr.mxu0 0.0
    %2000 = vmatpush2.msra.mxu0 0.0
    %2001 = vmatprep.subr.mxu0 0.0
    %2002 = vmatpush2.msra.mxu0 0.0
    %2003 = vmatprep.subr.mxu0 0.0
    %2004 = vmatpush2.msra.mxu0 0.0
    %2005 = vmatprep.subr.mxu0 0.0
    %2006 = vmatpush2.msra.mxu0 0.0
    %2007 = vmatprep.subr.mxu0 0.0
    %2008 = vmatpush2.msra.mxu0 0.0
    %2009 = vmatprep.subr.mxu0 0.0
    %2010 = vmatpush2.msra.mxu0 0.0
    %2011 = vmatprep.subr.mxu0 0.0
    %2012 = vmatpush2.msra.mxu0 0.0
    %2013 = vmatprep.mubr.f32.mxu0 0.0
    %2014 = vmatmul.mubr.f32.gmra.mxu0 %v1945
    %v2015 = vpop.f32.mrf.mxu0
    %v2016 = vadd.f32 0.0, %v2015
    %v2017 = vpop.f32.mrf.mxu0
    %2018 = vmatprep.mubr.f32.mxu0 0.0
    %2019 = vmatmul.mubr.f32.gmra.mxu0 %v1947
    %v2020 = vpop.f32.mrf.mxu0
    %v2021 = vadd.f32 0.0, %v2020
    %v2022 = vpop.f32.mrf.mxu0
    %2023 = vdwg.mxu0
    %v2024 = vadd.f32 %v1763, %v1846
    %v2025 = vadd.f32 %v1764, %v1851
    %v2026 = vadd.f32 %v1765, %v1931
    %v2027 = vadd.f32 %v1766, %v1936
    %v2028 = vadd.f32 %v1767, %v2016
    %v2029 = vadd.f32 %v1768, %v2021
    %v2030 = vxor.u32 %v2024, 2147483648
    %v2031 = vxor.u32 %v2025, 2147483648
    %v2032 = vxor.u32 %v2026, 2147483648
    %v2033 = vxor.u32 %v2027, 2147483648
    %v2034 = vxor.u32 %v2028, 2147483648
    %v2035 = vxor.u32 %v2029, 2147483648
    %v2036 = vmul.f32 %v2030, 1.442695
    %v2037 = vpow.pop %v2036
    %v2038 = vmul.f32 %v2031, 1.442695
    %v2039 = vpow.pop %v2038
    %v2040 = vmul.f32 %v2032, 1.442695
    %v2041 = vpow.pop %v2040
    %v2042 = vmul.f32 %v2033, 1.442695
    %v2043 = vpow.pop %v2042
    %v2044 = vmul.f32 %v2034, 1.442695
    %v2045 = vpow.pop %v2044
    %v2046 = vmul.f32 %v2035, 1.442695
    %v2047 = vpow.pop %v2046
    %v2048 = vadd.f32 %v2037, 1.0
    %v2049 = vadd.f32 %v2039, 1.0
    %v2050 = vadd.f32 %v2041, 1.0
    %v2051 = vadd.f32 %v2043, 1.0
    %v2052 = vadd.f32 %v2045, 1.0
    %v2053 = vadd.f32 %v2047, 1.0
    %v2054 = vrcp.pop %v2048
    %v2055 = vmul.f32 1.0, %v2054
    %v2056 = vrcp.pop %v2049
    %v2057 = vmul.f32 1.0, %v2056
    %v2058 = vrcp.pop %v2050
    %v2059 = vmul.f32 1.0, %v2058
    %v2060 = vrcp.pop %v2051
    %v2061 = vmul.f32 1.0, %v2060
    %v2062 = vrcp.pop %v2052
    %v2063 = vmul.f32 1.0, %v2062
    %v2064 = vrcp.pop %v2053
    %v2065 = vmul.f32 1.0, %v2064
    %v2066 = vtanh.pop %v2024
    %v2067 = vtanh.pop %v2025
    %v2068 = vtanh.pop %v2026
    %v2069 = vtanh.pop %v2027
    %v2070 = vtanh.pop %v2028
    %v2071 = vtanh.pop %v2029
    %v2072 = vmul.f32 %v2055, %v1720
    %v2073 = vmul.f32 %v2057, %v1721
    %v2074 = vmul.f32 %v2059, %v1722
    %v2075 = vmul.f32 %v2061, %v1723
    %v2076 = vmul.f32 %v2063, %v1724
    %v2077 = vmul.f32 %v2065, %v1725
    %2084 = vrot.lane.b32.xlu0 %v2066, 32
    %v2085 = vpop.permute.xlu0 %2084
    %2086 = vrot.lane.b32.xlu0 %v2067, 32
    %v2087 = vpop.permute.xlu0 %2086
    %2088 = vrot.lane.b32.xlu0 %v2068, 32
    %v2089 = vpop.permute.xlu0 %2088
    %2090 = vrot.lane.b32.xlu0 %v2069, 32
    %v2091 = vpop.permute.xlu0 %2090
    %2092 = vrot.lane.b32.xlu0 %v2070, 32
    %v2093 = vpop.permute.xlu0 %2092
    %2094 = vrot.lane.b32.xlu0 %v2071, 32
    %v2095 = vpop.permute.xlu0 %2094
    %v2102 = vmul.f32 %v2055, %v2085
    %v2103 = vmul.f32 %v2057, %v2087
    %v2104 = vmul.f32 %v2059, %v2089
    %v2105 = vmul.f32 %v2061, %v2091
    %v2106 = vmul.f32 %v2063, %v2093
    %v2107 = vmul.f32 %v2065, %v2095
    %2114 = vrot.lane.b32.xlu0 %v2102, 32
    %v2115 = vpop.permute.xlu0 %2114
    %2116 = vrot.lane.b32.xlu0 %v2103, 32
    %v2117 = vpop.permute.xlu0 %2116
    %2118 = vrot.lane.b32.xlu0 %v2104, 32
    %v2119 = vpop.permute.xlu0 %2118
    %2120 = vrot.lane.b32.xlu0 %v2105, 32
    %v2121 = vpop.permute.xlu0 %2120
    %2122 = vrot.lane.b32.xlu0 %v2106, 32
    %v2123 = vpop.permute.xlu0 %2122
    %2124 = vrot.lane.b32.xlu0 %v2107, 32
    %v2125 = vpop.permute.xlu0 %2124
    %v2132 = vadd.f32 %v2072, %v2115
    %v2133 = vadd.f32 %v2073, %v2117
    %v2134 = vadd.f32 %v2074, %v2119
    %v2135 = vadd.f32 %v2075, %v2121
    %v2136 = vadd.f32 %v2076, %v2123
    %v2137 = vadd.f32 %v2077, %v2125
    %v2138 = vtanh.pop %v2132
    %v2139 = vtanh.pop %v2133
    %v2140 = vtanh.pop %v2134
    %v2141 = vtanh.pop %v2135
    %v2142 = vtanh.pop %v2136
    %v2143 = vtanh.pop %v2137
    %2150 = vrot.lane.b32.xlu0 %v2138, 32
    %v2151 = vpop.permute.xlu0 %2150
    %2152 = vrot.lane.b32.xlu0 %v2139, 32
    %v2153 = vpop.permute.xlu0 %2152
    %2154 = vrot.lane.b32.xlu0 %v2140, 32
    %v2155 = vpop.permute.xlu0 %2154
    %2156 = vrot.lane.b32.xlu0 %v2141, 32
    %v2157 = vpop.permute.xlu0 %2156
    %2158 = vrot.lane.b32.xlu0 %v2142, 32
    %v2159 = vpop.permute.xlu0 %2158
    %2160 = vrot.lane.b32.xlu0 %v2143, 32
    %v2161 = vpop.permute.xlu0 %2160
    %v2168 = vmul.f32 %v2055, %v2151
    %v2169 = vmul.f32 %v2057, %v2153
    %v2170 = vmul.f32 %v2059, %v2155
    %v2171 = vmul.f32 %v2061, %v2157
    %v2172 = vmul.f32 %v2063, %v2159
    %v2173 = vmul.f32 %v2065, %v2161
    %vm2174 = vcmask 785920
    %v2175 = vsel %vm2174, %v2168, 0.0
    %v2176 = vsel %vm2174, %v2170, 0.0
    %v2177 = vadd.f32 %v2175, %v2176
    %v2178 = vsel %vm2174, %v2172, 0.0
    %v2179 = vadd.f32 %v2177, %v2178
    %v2180 = vsel %vm2174, %v2169, 0.0
    %v2181 = vsel %vm2174, %v2171, 0.0
    %v2182 = vadd.f32 %v2180, %v2181
    %v2183 = vsel %vm2174, %v2173, 0.0
    %v2184 = vadd.f32 %v2182, %v2183
    %v2185 = vrcp.pop 3.0
    %v2186 = vmul.f32 %v2179, %v2185
    %v2187 = vmul.f32 %v2184, %v2185
    %v2188 = vsel %vm2174, %v2186, 0.0
    %v2189 = vsel %vm2174, %v2187, 0.0
    %v2190 = vadd.f32 %v2188, %v2189
    %v2191 = vrot.slane %v2190, 4
    %v2192 = vadd.f32 %v2190, %v2191
    %v2193 = vrot.slane %v2192, 2
    %v2194 = vadd.f32 %v2192, %v2193
    %v2195 = vrot.slane %v2194, 1
    %v2196 = vadd.f32 %v2194, %v2195
    %v2197 = vrcp.pop 16.0
    %v2198 = vmul.f32 %v2196, %v2197
    %v2199 = vsub.f32 %v2186, %v2198
    %v2200 = vsub.f32 %v2187, %v2198
    %v2201 = vmul.f32 %v2199, %v2199
    %v2202 = vmul.f32 %v2200, %v2200
    %v2203 = vsel %vm2174, %v2201, 0.0
    %v2204 = vsel %vm2174, %v2202, 0.0
    %v2205 = vadd.f32 %v2203, %v2204
    %v2206 = vrot.slane %v2205, 4
    %v2207 = vadd.f32 %v2205, %v2206
    %v2208 = vrot.slane %v2207, 2
    %v2209 = vadd.f32 %v2207, %v2208
    %v2210 = vrot.slane %v2209, 1
    %v2211 = vadd.f32 %v2209, %v2210
    %v2212 = vmul.f32 %v2211, %v2197
    %v2213 = vadd.f32 %v2212, 1e-05
    %v2214 = vrsqrt.pop %v2213
    %v2215 = vmul.f32 %v2199, %v2214
    %v2216 = vmul.f32 %v2200, %v2214
    %v2217 = vld [vmem:[%s4] sm:$0x1]
    %v2219 = vlaneseq
    %v2220 = vshrl.u32 %v2219, 7
    %v2221 = vsub.s32 0, %v2220
    %v2222 = vrot.slane %v2217, %v2221
    %2223 = vrot.lane.b32.xlu0 %v2222, 64
    %v2224 = vpop.permute.xlu0 %2223
    %v2226 = vmul.f32 %v2215, %v2224
    %v2227 = vmul.f32 %v2216, %v2224
    %v2228 = vld [vmem:[%s5] sm:$0x1]
    %v2230 = vlaneseq
    %v2231 = vshrl.u32 %v2230, 7
    %v2232 = vsub.s32 0, %v2231
    %v2233 = vrot.slane %v2228, %v2232
    %2234 = vrot.lane.b32.xlu0 %v2233, 64
    %v2235 = vpop.permute.xlu0 %2234
    %v2237 = vadd.f32 %v2226, %v2235
    %v2238 = vadd.f32 %v2227, %v2235
    %2241 = vrot.lane.b32.xlu0 %v2237, 64
    %v2242 = vpop.permute.xlu0 %2241
    %2243 = vrot.lane.b32.xlu0 %v2238, 64
    %v2244 = vpop.permute.xlu0 %2243
    %2247 = vst.msk [vmem:[#allocation9] sm:$0xff] %vm84, %v2242
    %2248 = vst.msk [vmem:[#allocation9 + $0x8] sm:$0xff] %vm84, %v2244
    // Predicated region
    $region38: #{tpu_custom_call.1} parent=1 // pred_check
      _
    $region39: #{tpu_custom_call.1} parent=1 // pred_check_branch
      %2250 = sbr.rel (0) target = $region41
    $region40: #{tpu_custom_call.1} parent=1 // pred_region
      %s2252 = ssub.s32 256, 256
      %2253 = vsyncadd [#allocation5], %s2252
      %s2254 = sshll.u32 [#allocation9], 4
      %s2255 = int_to_ptr.vmem [resolvable:$true] %s2254
      %2260 = dma.vmem_to_hbm [thread:$0]  %s2255, 256, %s6, [#allocation5], 128, 128, 8
    $region41: #{tpu_custom_call.1} parent=1 // pred_fallthru
      _
    // Predicated region
    $region42: #{tpu_custom_call.1} parent=1 // pred_check
      _
    $region43: #{tpu_custom_call.1} parent=1 // pred_check_branch
      %2262 = sbr.rel (0) target = $region45
    $region44: #{tpu_custom_call.1} parent=1 // pred_region
      %2263 = dma.done [#allocation5], 256
    $region45: #{tpu_custom_call.1} parent=1 // pred_fallthru
      _
    %2264 = vsyncpa [#allocation4], 1
    %2265 = vsyncpa [#allocation7], 1
    %2266 = vsyncpa [#allocation5], 1

</llo_original>
